<compile_context>
chip_gen: v7x
topology: tpu7x:2x2x1
jax: 0.10.0
libtpu: 0.0.40
codegen_flags: <defaults>
</compile_context>

<pallas_src>
import functools

import numpy as np

import jax
import jax.numpy as jnp
from jax.experimental import pallas as pl
from jax.experimental.pallas import tpu as pltpu


# ----------------------------------------------------------------------------
# Fused kernel: per-batch GCN + node-sum + temporal Conv1d + ReLU + AvgPool
# ----------------------------------------------------------------------------
def _fused_kernel(x_ref, ablk_ref, wg_ref, bg_ref, s_ref, wc_ref, bc_ref, p_ref, o_ref,
                  *, K, L_full, dot_dtype):
    # x_ref:    (1, T*N, Cin)          one batch, all timesteps/nodes flattened
    # ablk_ref: (T*N, T*N)             kron(I_T, A)
    # wg_ref:   (Cin, Cg), bg_ref: (1, Cg)
    # s_ref:    (T, T*N)               node-sum operator
    # wc_ref:   (K*Ct, Cout), bc_ref: (1, Cout)   im2col conv weight / bias
    # p_ref:    (L_pool, L_full)       folds cnn stride subsample + average pool
    # o_ref:    (1, L_pool, Cout)
    def mxu(a, b):
        return jnp.dot(a.astype(dot_dtype), b.astype(dot_dtype),
                       preferred_element_type=jnp.float32)

    x = x_ref[0].astype(jnp.float32)                                       # (T*N, Cin)

    # --- GCN for every timestep in one shot: relu((I_T (x) A) @ X @ Wg + bg)
    ax = mxu(ablk_ref[...], x)                                             # (T*N, Cin)
    h = jnp.maximum(mxu(ax, wg_ref[...]) + bg_ref[...], 0.0)               # (T*N, Cg)

    # --- node-sum + channel concat via one summing matmul
    hx = jnp.concatenate([h.astype(dot_dtype), x.astype(dot_dtype)], axis=1)  # (T*N, Ct)
    conv_in = mxu(s_ref[...], hx)                                          # (T, Ct)

    # --- temporal Conv1d as a single im2col matmul (contraction K*Ct)
    x_col = jnp.concatenate([conv_in[k:k + L_full, :] for k in range(K)], axis=1)  # (L_full, K*Ct)
    y = jnp.maximum(mxu(x_col, wc_ref[...]) + bc_ref[...], 0.0)            # (L_full, Cout)

    # --- cnn stride subsample + AvgPool folded into one pooling-matrix matmul
    o_ref[0] = mxu(p_ref[...], y).astype(o_ref.dtype)                      # (L_pool, Cout)


# ----------------------------------------------------------------------------
# Full forward (GCN_1DCNN.forward)
# ----------------------------------------------------------------------------
def gcn_1dcnn_forward(features, A, Wg, bg, Wc, bc, *,
                      cnn_stride, pool_k, pool_stride, mxu_dtype=jnp.float32):
    B, T, N, Cin = features.shape
    Cg = Wg.shape[1]
    Ct = Cg + Cin
    Cout, Cin_conv, K = Wc.shape
    assert Cin_conv == Ct, (Cin_conv, Ct)
    L_full = T - K + 1
    L_conv = (T - K) // cnn_stride + 1
    L_pool = (L_conv - pool_k) // pool_stride + 1

    x_flat = features.reshape(B, T * N, Cin)

    # Block-diagonal A: applies the graph conv to every timestep in one matmul.
    a_blk = jnp.kron(jnp.eye(T, dtype=jnp.float32), A.astype(jnp.float32)).astype(mxu_dtype)
    # Node-sum operator: (S @ M)[t] = sum_n M[t*N + n].
    s_sum = jnp.kron(jnp.eye(T, dtype=jnp.float32),
                     jnp.ones((1, N), jnp.float32)).astype(mxu_dtype)
    # im2col conv weight: column (k*Ct + c) <- Wc[o, c, k].
    wc_flat = jnp.transpose(Wc, (2, 1, 0)).reshape(K * Ct, Cout).astype(mxu_dtype)
    # Pooling matrix: out[p] = mean_i y_full[(p*pool_stride + i) * cnn_stride].
    p_np = np.zeros((L_pool, L_full), np.float32)
    for p in range(L_pool):
        for i in range(pool_k):
            p_np[p, (p * pool_stride + i) * cnn_stride] = 1.0 / pool_k
    p_mat = jnp.asarray(p_np, dtype=mxu_dtype)

    kern = functools.partial(_fused_kernel, K=K, L_full=L_full, dot_dtype=mxu_dtype)
    out = pl.pallas_call(
        kern,
        out_shape=jax.ShapeDtypeStruct((B, L_pool, Cout), jnp.float32),
        grid_spec=pltpu.PrefetchScalarGridSpec(
            num_scalar_prefetch=0,
            grid=(B,),
            in_specs=[
                pl.BlockSpec((1, T * N, Cin), lambda b: (b, 0, 0)),
                pl.BlockSpec((T * N, T * N), lambda b: (0, 0)),
                pl.BlockSpec((Cin, Cg), lambda b: (0, 0)),
                pl.BlockSpec((1, Cg), lambda b: (0, 0)),
                pl.BlockSpec((T, T * N), lambda b: (0, 0)),
                pl.BlockSpec((K * Ct, Cout), lambda b: (0, 0)),
                pl.BlockSpec((1, Cout), lambda b: (0, 0)),
                pl.BlockSpec((L_pool, L_full), lambda b: (0, 0)),
            ],
            out_specs=pl.BlockSpec((1, L_pool, Cout), lambda b: (b, 0, 0)),
        ),
        compiler_params=pltpu.CompilerParams(dimension_semantics=("parallel",)),
    )(x_flat, a_blk, Wg.astype(mxu_dtype), bg.reshape(1, Cg).astype(jnp.float32),
      s_sum, wc_flat, bc.reshape(1, Cout).astype(jnp.float32), p_mat)

    # back to PyTorch's (B, C_out, L_pool)
    return jnp.transpose(out, (0, 2, 1))


# ----------------------------------------------------------------------------
# Pure-JAX reference (for sanity checking the kernel)
# ----------------------------------------------------------------------------
def reference(features, A, Wg, bg, Wc, bc, *, cnn_stride, pool_k, pool_stride):
    h = jnp.einsum('nm,btmc->btnc', A, features)
    h = jnp.maximum(jnp.einsum('btnc,cd->btnd', h, Wg) + bg, 0.0)
    out = jnp.concatenate([h, features], axis=-1)                             # (B,T,N,Ct)
    out = out.sum(axis=2)                                                     # (B,T,Ct)
    x = jnp.transpose(out, (0, 2, 1))                                         # (B,Ct,T)
    y = jax.lax.conv_general_dilated(x, Wc, window_strides=(cnn_stride,),
                                     padding='VALID',
                                     dimension_numbers=('NCH', 'OIH', 'NCH'))
    y = jnp.maximum(y + bc[None, :, None], 0.0)
    z = jax.lax.reduce_window(y, 0.0, jax.lax.add,
                              (1, 1, pool_k), (1, 1, pool_stride), 'VALID') / pool_k
    return z


if __name__ == "__main__":
    # GCN_1DCNN(num_nodes=8, cnn_numbers=(0, 8, 2), in_dim=16, out_dim=0, pool_stride=4)
    B, T, N, Cin = 2, 32, 8, 16
    out_dim = Cin                       # out_dim == 0 -> in_dim
    cnn_out_dim, kernel_len, cnn_stride = out_dim, 8, 2   # cnn_out_dim == 0 -> out_dim
    conv_in = Cin + out_dim             # 32
    conv_out = Cin + cnn_out_dim        # 32
    pool_k = kernel_len // 4            # 2
    pool_stride = 4

    key = jax.random.PRNGKey(0)
    k1, k2, k3, k4, k5, k6 = jax.random.split(key, 6)
    Wg = jax.random.normal(k1, (Cin, out_dim), jnp.float32) * 0.1
    bg = jax.random.normal(k2, (out_dim,), jnp.float32) * 0.1
    Wc = jax.random.normal(k3, (conv_out, conv_in, kernel_len), jnp.float32) * 0.1
    bc = jax.random.normal(k4, (conv_out,), jnp.float32) * 0.1
    features = jax.random.normal(k5, (B, T, N, Cin), jnp.float32)
    A = jax.random.uniform(k6, (N, N), jnp.float32)

    out = gcn_1dcnn_forward(features, A, Wg, bg, Wc, bc,
                            cnn_stride=cnn_stride, pool_k=pool_k, pool_stride=pool_stride)
    out = jax.block_until_ready(out)

    ref = reference(features, A, Wg, bg, Wc, bc,
                    cnn_stride=cnn_stride, pool_k=pool_k, pool_stride=pool_stride)
    ref = jax.block_until_ready(ref)

    assert out.shape == ref.shape, (out.shape, ref.shape)
    assert jnp.allclose(out, ref, atol=1e-3, rtol=1e-3), float(jnp.max(jnp.abs(out - ref)))
    print("KERNEL_OK")
</pallas_src>

<mosaic_0001>
module attributes {stable_mosaic.version = 11 : i64} {
  func.func @_fused_kernel(%arg0: i32, %arg1: memref<1x256x16xf32, #tpu.memory_space<vmem>>, %arg2: memref<256x256xf32, #tpu.memory_space<vmem>>, %arg3: memref<16x16xf32, #tpu.memory_space<vmem>>, %arg4: memref<1x16xf32, #tpu.memory_space<vmem>>, %arg5: memref<32x256xf32, #tpu.memory_space<vmem>>, %arg6: memref<256x32xf32, #tpu.memory_space<vmem>>, %arg7: memref<1x32xf32, #tpu.memory_space<vmem>>, %arg8: memref<3x25xf32, #tpu.memory_space<vmem>>, %arg9: memref<1x3x32xf32, #tpu.memory_space<vmem>>) attributes {dimension_semantics = [#tpu.dimension_semantics<parallel>], iteration_bounds = array<i64: 2>, scalar_prefetch = 0 : i64, scratch_operands = 0 : i64, tpu.core_type = #tpu.core_type<tc>, window_params = [{transform_indices = @transform_0, window_bounds = array<i64: 1, 256, 16>}, {pipeline_mode = #tpu.pipeline_mode<synchronous>, transform_indices = @transform_1, window_bounds = array<i64: 256, 256>}, {pipeline_mode = #tpu.pipeline_mode<synchronous>, transform_indices = @transform_2, window_bounds = array<i64: 16, 16>}, {pipeline_mode = #tpu.pipeline_mode<synchronous>, transform_indices = @transform_3, window_bounds = array<i64: 1, 16>}, {pipeline_mode = #tpu.pipeline_mode<synchronous>, transform_indices = @transform_4, window_bounds = array<i64: 32, 256>}, {pipeline_mode = #tpu.pipeline_mode<synchronous>, transform_indices = @transform_5, window_bounds = array<i64: 256, 32>}, {pipeline_mode = #tpu.pipeline_mode<synchronous>, transform_indices = @transform_6, window_bounds = array<i64: 1, 32>}, {pipeline_mode = #tpu.pipeline_mode<synchronous>, transform_indices = @transform_7, window_bounds = array<i64: 3, 25>}, {transform_indices = @transform_8, window_bounds = array<i64: 1, 3, 32>}]} {
    %c0 = arith.constant 0 : index
    %c0_0 = arith.constant 0 : index
    %c0_1 = arith.constant 0 : index
    %0 = vector.load %arg1[%c0, %c0_0, %c0_1] : memref<1x256x16xf32, #tpu.memory_space<vmem>>, vector<1x256x16xf32>
    %1 = vector.shape_cast %0 : vector<1x256x16xf32> to vector<256x16xf32>
    %c0_2 = arith.constant 0 : index
    %c0_3 = arith.constant 0 : index
    %2 = vector.load %arg2[%c0_2, %c0_3] : memref<256x256xf32, #tpu.memory_space<vmem>>, vector<256x256xf32>
    %cst = arith.constant dense<0.000000e+00> : vector<256x16xf32>
    %3 = tpu.matmul %2, %1, %cst {dimension_numbers = #tpu.dot_dimension_numbers<[1], [0], [0], [1], [0, 0, 1, 1], [], []>} : vector<256x256xf32>, vector<256x16xf32>, vector<256x16xf32> -> vector<256x16xf32>
    %c0_4 = arith.constant 0 : index
    %c0_5 = arith.constant 0 : index
    %4 = vector.load %arg3[%c0_4, %c0_5] : memref<16x16xf32, #tpu.memory_space<vmem>>, vector<16x16xf32>
    %cst_6 = arith.constant dense<0.000000e+00> : vector<256x16xf32>
    %5 = tpu.matmul %3, %4, %cst_6 {dimension_numbers = #tpu.dot_dimension_numbers<[1], [0], [0], [1], [0, 0, 1, 1], [], []>} : vector<256x16xf32>, vector<16x16xf32>, vector<256x16xf32> -> vector<256x16xf32>
    %c0_7 = arith.constant 0 : index
    %c0_8 = arith.constant 0 : index
    %6 = vector.load %arg4[%c0_7, %c0_8] : memref<1x16xf32, #tpu.memory_space<vmem>>, vector<1x16xf32>
    %7 = vector.broadcast %6 : vector<1x16xf32> to vector<256x16xf32>
    %8 = arith.addf %5, %7 : vector<256x16xf32>
    %cst_9 = arith.constant 0.000000e+00 : f32
    %9 = vector.broadcast %cst_9 : f32 to vector<256x16xf32>
    %10 = arith.maximumf %8, %9 : vector<256x16xf32>
    %11 = tpu.concatenate %10, %1 in 1 : vector<256x16xf32>, vector<256x16xf32> -> vector<256x32xf32>
    %c0_10 = arith.constant 0 : index
    %c0_11 = arith.constant 0 : index
    %12 = vector.load %arg5[%c0_10, %c0_11] : memref<32x256xf32, #tpu.memory_space<vmem>>, vector<32x256xf32>
    %cst_12 = arith.constant dense<0.000000e+00> : vector<32x32xf32>
    %13 = tpu.matmul %12, %11, %cst_12 {dimension_numbers = #tpu.dot_dimension_numbers<[1], [0], [0], [1], [0, 0, 1, 1], [], []>} : vector<32x256xf32>, vector<256x32xf32>, vector<32x32xf32> -> vector<32x32xf32>
    %14 = vector.extract_strided_slice %13 {offsets = [0, 0], sizes = [25, 32], strides = [1, 1]} : vector<32x32xf32> to vector<25x32xf32>
    %15 = vector.extract_strided_slice %13 {offsets = [1, 0], sizes = [25, 32], strides = [1, 1]} : vector<32x32xf32> to vector<25x32xf32>
    %16 = vector.extract_strided_slice %13 {offsets = [2, 0], sizes = [25, 32], strides = [1, 1]} : vector<32x32xf32> to vector<25x32xf32>
    %17 = vector.extract_strided_slice %13 {offsets = [3, 0], sizes = [25, 32], strides = [1, 1]} : vector<32x32xf32> to vector<25x32xf32>
    %18 = vector.extract_strided_slice %13 {offsets = [4, 0], sizes = [25, 32], strides = [1, 1]} : vector<32x32xf32> to vector<25x32xf32>
    %19 = vector.extract_strided_slice %13 {offsets = [5, 0], sizes = [25, 32], strides = [1, 1]} : vector<32x32xf32> to vector<25x32xf32>
    %20 = vector.extract_strided_slice %13 {offsets = [6, 0], sizes = [25, 32], strides = [1, 1]} : vector<32x32xf32> to vector<25x32xf32>
    %21 = vector.extract_strided_slice %13 {offsets = [7, 0], sizes = [25, 32], strides = [1, 1]} : vector<32x32xf32> to vector<25x32xf32>
    %22 = tpu.concatenate %14, %15, %16, %17, %18, %19, %20, %21 in 1 : vector<25x32xf32>, vector<25x32xf32>, vector<25x32xf32>, vector<25x32xf32>, vector<25x32xf32>, vector<25x32xf32>, vector<25x32xf32>, vector<25x32xf32> -> vector<25x256xf32>
    %c0_13 = arith.constant 0 : index
    %c0_14 = arith.constant 0 : index
    %23 = vector.load %arg6[%c0_13, %c0_14] : memref<256x32xf32, #tpu.memory_space<vmem>>, vector<256x32xf32>
    %cst_15 = arith.constant dense<0.000000e+00> : vector<25x32xf32>
    %24 = tpu.matmul %22, %23, %cst_15 {dimension_numbers = #tpu.dot_dimension_numbers<[1], [0], [0], [1], [0, 0, 1, 1], [], []>} : vector<25x256xf32>, vector<256x32xf32>, vector<25x32xf32> -> vector<25x32xf32>
    %c0_16 = arith.constant 0 : index
    %c0_17 = arith.constant 0 : index
    %25 = vector.load %arg7[%c0_16, %c0_17] : memref<1x32xf32, #tpu.memory_space<vmem>>, vector<1x32xf32>
    %26 = vector.broadcast %25 : vector<1x32xf32> to vector<25x32xf32>
    %27 = arith.addf %24, %26 : vector<25x32xf32>
    %cst_18 = arith.constant 0.000000e+00 : f32
    %28 = vector.broadcast %cst_18 : f32 to vector<25x32xf32>
    %29 = arith.maximumf %27, %28 : vector<25x32xf32>
    %c0_19 = arith.constant 0 : index
    %c0_20 = arith.constant 0 : index
    %30 = vector.load %arg8[%c0_19, %c0_20] : memref<3x25xf32, #tpu.memory_space<vmem>>, vector<3x25xf32>
    %cst_21 = arith.constant dense<0.000000e+00> : vector<3x32xf32>
    %31 = tpu.matmul %30, %29, %cst_21 {dimension_numbers = #tpu.dot_dimension_numbers<[1], [0], [0], [1], [0, 0, 1, 1], [], []>} : vector<3x25xf32>, vector<25x32xf32>, vector<3x32xf32> -> vector<3x32xf32>
    %c0_22 = arith.constant 0 : index
    %c0_23 = arith.constant 0 : index
    %c0_24 = arith.constant 0 : index
    %32 = vector.load %arg9[%c0_22, %c0_23, %c0_24] : memref<1x3x32xf32, #tpu.memory_space<vmem>>, vector<1x3x32xf32>
    %33 = vector.shape_cast %32 : vector<1x3x32xf32> to vector<3x32xf32>
    %34 = vector.shape_cast %31 : vector<3x32xf32> to vector<1x3x32xf32>
    tpu.vector_store %arg9[%c0_22, %c0_23, %c0_24], %34 {strides = array<i32>} : memref<1x3x32xf32, #tpu.memory_space<vmem>>, vector<1x3x32xf32>,
    return
  }
  func.func @transform_0(%arg0: i32) -> (i32, i32, i32) {
    %c0_i32 = arith.constant 0 : i32
    %c0_i32_0 = arith.constant 0 : i32
    %c0_i32_1 = arith.constant 0 : i32
    return %arg0, %c0_i32, %c0_i32_0 : i32, i32, i32
  }
  func.func @transform_1(%arg0: i32) -> (i32, i32) {
    %c0_i32 = arith.constant 0 : i32
    %c0_i32_0 = arith.constant 0 : i32
    %c0_i32_1 = arith.constant 0 : i32
    return %c0_i32, %c0_i32_0 : i32, i32
  }
  func.func @transform_2(%arg0: i32) -> (i32, i32) {
    %c0_i32 = arith.constant 0 : i32
    %c0_i32_0 = arith.constant 0 : i32
    %c0_i32_1 = arith.constant 0 : i32
    return %c0_i32, %c0_i32_0 : i32, i32
  }
  func.func @transform_3(%arg0: i32) -> (i32, i32) {
    %c0_i32 = arith.constant 0 : i32
    %c0_i32_0 = arith.constant 0 : i32
    %c0_i32_1 = arith.constant 0 : i32
    return %c0_i32, %c0_i32_0 : i32, i32
  }
  func.func @transform_4(%arg0: i32) -> (i32, i32) {
    %c0_i32 = arith.constant 0 : i32
    %c0_i32_0 = arith.constant 0 : i32
    %c0_i32_1 = arith.constant 0 : i32
    return %c0_i32, %c0_i32_0 : i32, i32
  }
  func.func @transform_5(%arg0: i32) -> (i32, i32) {
    %c0_i32 = arith.constant 0 : i32
    %c0_i32_0 = arith.constant 0 : i32
    %c0_i32_1 = arith.constant 0 : i32
    return %c0_i32, %c0_i32_0 : i32, i32
  }
  func.func @transform_6(%arg0: i32) -> (i32, i32) {
    %c0_i32 = arith.constant 0 : i32
    %c0_i32_0 = arith.constant 0 : i32
    %c0_i32_1 = arith.constant 0 : i32
    return %c0_i32, %c0_i32_0 : i32, i32
  }
  func.func @transform_7(%arg0: i32) -> (i32, i32) {
    %c0_i32 = arith.constant 0 : i32
    %c0_i32_0 = arith.constant 0 : i32
    %c0_i32_1 = arith.constant 0 : i32
    return %c0_i32, %c0_i32_0 : i32, i32
  }
  func.func @transform_8(%arg0: i32) -> (i32, i32, i32) {
    %c0_i32 = arith.constant 0 : i32
    %c0_i32_0 = arith.constant 0 : i32
    %c0_i32_1 = arith.constant 0 : i32
    return %arg0, %c0_i32, %c0_i32_0 : i32, i32, i32
  }
}

</mosaic_0001>

<llo_original>
// kernel: tpu_custom_call.1
$region0: #{tpu_custom_call.1}
  #allocation0 [shape = 'u32[]', space=smem, size = 0x4, offset = 0x4, fixed_abs, tag = 'smem constant byte address 0x4 - core index']
  #allocation1 [shape = 'u32[144,128]{1,0:T(1,128)}', space=vmem, size = 0x12000, scoped, tag = 'internal scratch']
  %s0 = inlined_call_operand.vmem [shape: f32[2,256,16], index: 0, kind: input, shape index: {}]
  %s1 = inlined_call_operand.vmem [shape: f32[256,256], index: 1, kind: input, shape index: {}]
  %s2 = inlined_call_operand.vmem [shape: f32[16,16], index: 2, kind: input, shape index: {}]
  %s3 = inlined_call_operand.vmem [shape: f32[1,16], index: 3, kind: input, shape index: {}]
  %s4 = inlined_call_operand.vmem [shape: f32[32,256], index: 4, kind: input, shape index: {}]
  %s5 = inlined_call_operand.vmem [shape: f32[256,32], index: 5, kind: input, shape index: {}]
  %s6 = inlined_call_operand.vmem [shape: f32[1,32], index: 6, kind: input, shape index: {}]
  %s7 = inlined_call_operand.vmem [shape: f32[3,25], index: 7, kind: input, shape index: {}]
  %s8 = inlined_call_operand.vmem [shape: f32[2,3,32], index: 8, kind: output, shape index: {}]
  %s9 = sld [smem:[#allocation0]]
  $region65: #{tpu_custom_call.1} parent=0
    _
  %s11 = ssub.s32 1, %s9
  %s12 = scalar_select 0, %s11, %s9
  loop: start=0, step=1, limit=4
  $region2: #{tpu_custom_call.1} parent=0 // loop_pre_header
    _
  $region3: #{tpu_custom_call.1} parent=0 // loop_header
    %s14 = sphi 0, %s18
    %p15 = scmp.ge.s32.totalorder %s14, 4
    %s24 = sphi 0, %s26
    %s27 = sphi 0, %s24
    %s28 = sphi 0, %s27
    %s44 = sphi 0, %s28
    %s48 = sphi 0, %s48
    %s50 = sphi 0, %s48
    %s51 = sphi 0, %s50
    %s65 = sphi 0, %s51
    %s69 = sphi 0, %s69
    %s71 = sphi 0, %s69
    %s72 = sphi 0, %s71
    %s86 = sphi 0, %s72
    %s90 = sphi 0, %s90
    %s92 = sphi 0, %s90
    %s93 = sphi 0, %s92
    %s107 = sphi 0, %s93
    %s111 = sphi 0, %s111
    %s113 = sphi 0, %s111
    %s114 = sphi 0, %s113
    %s128 = sphi 0, %s114
    %s132 = sphi 0, %s132
    %s134 = sphi 0, %s132
    %s135 = sphi 0, %s134
    %s149 = sphi 0, %s135
    %s153 = sphi 0, %s153
    %s155 = sphi 0, %s153
    %s156 = sphi 0, %s155
    %s170 = sphi 0, %s156
    %s174 = sphi 0, %s174
    %s176 = sphi 0, %s174
    %s177 = sphi 0, %s176
    %s191 = sphi 0, %s177
    %s197 = sphi 0, %s199
    %s200 = sphi 0, %s197
    %s201 = sphi 0, %s200
    %s217 = sphi 0, %s201
  $region4: #{tpu_custom_call.1} parent=0 // loop_header_branch
    %17 = sbr.rel (%p15) target = $region8
  $region5: #{tpu_custom_call.1} parent=0 // loop_body
    %s19 = ssub.s32 %s14, 1
    %s20 = ssub.s32 %s14, 2
    %s21 = sadd.s32 %s14, 1
    %s22 = ssub.s32 %s14, %s21
    %p23 = scmp.eq.s32.totalorder %s22, 0
    %s25 = sadd.s32 %s24, 1
    %s26 = scalar_select %p23, %s24, %s25
    %p29 = pneg %p23
    %p30 = scmp.eq.s32.totalorder %s14, 1
    %p31 = por %p29, %p30
    %p32 = scmp.ne.s32.totalorder %s24, %s27
    %p33 = scmp.eq.s32.totalorder %s14, 0
    %p34 = por %p32, %p33
    %p35 = scmp.ne.s32.totalorder %s24, %s27
    %p36 = scmp.eq.s32.totalorder %s19, 1
    %p37 = por %p35, %p36
    %p38 = scmp.ne.s32.totalorder %s27, %s28
    %p39 = scmp.eq.s32.totalorder %s19, 0
    %p40 = por %p38, %p39
    %p41 = scmp.ne.s32.totalorder %s27, %s28
    %p42 = scmp.eq.s32.totalorder %s20, 1
    %p43 = por %p41, %p42
    %p45 = scmp.ne.s32.totalorder %s28, %s44
    %p46 = scmp.eq.s32.totalorder %s20, 0
    %p47 = por %p45, %p46
    %s49 = sadd.s32 %s48, 1
    %p52 = scmp.eq.s32.totalorder %s14, 1
    %p53 = scmp.ne.s32.totalorder %s48, %s50
    %p54 = scmp.eq.s32.totalorder %s14, 0
    %p55 = por %p53, %p54
    %p56 = scmp.ne.s32.totalorder %s48, %s50
    %p57 = scmp.eq.s32.totalorder %s19, 1
    %p58 = por %p56, %p57
    %p59 = scmp.ne.s32.totalorder %s50, %s51
    %p60 = scmp.eq.s32.totalorder %s19, 0
    %p61 = por %p59, %p60
    %p62 = scmp.ne.s32.totalorder %s50, %s51
    %p63 = scmp.eq.s32.totalorder %s20, 1
    %p64 = por %p62, %p63
    %p66 = scmp.ne.s32.totalorder %s51, %s65
    %p67 = scmp.eq.s32.totalorder %s20, 0
    %p68 = por %p66, %p67
    %s70 = sadd.s32 %s69, 1
    %p73 = scmp.eq.s32.totalorder %s14, 1
    %p74 = scmp.ne.s32.totalorder %s69, %s71
    %p75 = scmp.eq.s32.totalorder %s14, 0
    %p76 = por %p74, %p75
    %p77 = scmp.ne.s32.totalorder %s69, %s71
    %p78 = scmp.eq.s32.totalorder %s19, 1
    %p79 = por %p77, %p78
    %p80 = scmp.ne.s32.totalorder %s71, %s72
    %p81 = scmp.eq.s32.totalorder %s19, 0
    %p82 = por %p80, %p81
    %p83 = scmp.ne.s32.totalorder %s71, %s72
    %p84 = scmp.eq.s32.totalorder %s20, 1
    %p85 = por %p83, %p84
    %p87 = scmp.ne.s32.totalorder %s72, %s86
    %p88 = scmp.eq.s32.totalorder %s20, 0
    %p89 = por %p87, %p88
    %s91 = sadd.s32 %s90, 1
    %p94 = scmp.eq.s32.totalorder %s14, 1
    %p95 = scmp.ne.s32.totalorder %s90, %s92
    %p96 = scmp.eq.s32.totalorder %s14, 0
    %p97 = por %p95, %p96
    %p98 = scmp.ne.s32.totalorder %s90, %s92
    %p99 = scmp.eq.s32.totalorder %s19, 1
    %p100 = por %p98, %p99
    %p101 = scmp.ne.s32.totalorder %s92, %s93
    %p102 = scmp.eq.s32.totalorder %s19, 0
    %p103 = por %p101, %p102
    %p104 = scmp.ne.s32.totalorder %s92, %s93
    %p105 = scmp.eq.s32.totalorder %s20, 1
    %p106 = por %p104, %p105
    %p108 = scmp.ne.s32.totalorder %s93, %s107
    %p109 = scmp.eq.s32.totalorder %s20, 0
    %p110 = por %p108, %p109
    %s112 = sadd.s32 %s111, 1
    %p115 = scmp.eq.s32.totalorder %s14, 1
    %p116 = scmp.ne.s32.totalorder %s111, %s113
    %p117 = scmp.eq.s32.totalorder %s14, 0
    %p118 = por %p116, %p117
    %p119 = scmp.ne.s32.totalorder %s111, %s113
    %p120 = scmp.eq.s32.totalorder %s19, 1
    %p121 = por %p119, %p120
    %p122 = scmp.ne.s32.totalorder %s113, %s114
    %p123 = scmp.eq.s32.totalorder %s19, 0
    %p124 = por %p122, %p123
    %p125 = scmp.ne.s32.totalorder %s113, %s114
    %p126 = scmp.eq.s32.totalorder %s20, 1
    %p127 = por %p125, %p126
    %p129 = scmp.ne.s32.totalorder %s114, %s128
    %p130 = scmp.eq.s32.totalorder %s20, 0
    %p131 = por %p129, %p130
    %s133 = sadd.s32 %s132, 1
    %p136 = scmp.eq.s32.totalorder %s14, 1
    %p137 = scmp.ne.s32.totalorder %s132, %s134
    %p138 = scmp.eq.s32.totalorder %s14, 0
    %p139 = por %p137, %p138
    %p140 = scmp.ne.s32.totalorder %s132, %s134
    %p141 = scmp.eq.s32.totalorder %s19, 1
    %p142 = por %p140, %p141
    %p143 = scmp.ne.s32.totalorder %s134, %s135
    %p144 = scmp.eq.s32.totalorder %s19, 0
    %p145 = por %p143, %p144
    %p146 = scmp.ne.s32.totalorder %s134, %s135
    %p147 = scmp.eq.s32.totalorder %s20, 1
    %p148 = por %p146, %p147
    %p150 = scmp.ne.s32.totalorder %s135, %s149
    %p151 = scmp.eq.s32.totalorder %s20, 0
    %p152 = por %p150, %p151
    %s154 = sadd.s32 %s153, 1
    %p157 = scmp.eq.s32.totalorder %s14, 1
    %p158 = scmp.ne.s32.totalorder %s153, %s155
    %p159 = scmp.eq.s32.totalorder %s14, 0
    %p160 = por %p158, %p159
    %p161 = scmp.ne.s32.totalorder %s153, %s155
    %p162 = scmp.eq.s32.totalorder %s19, 1
    %p163 = por %p161, %p162
    %p164 = scmp.ne.s32.totalorder %s155, %s156
    %p165 = scmp.eq.s32.totalorder %s19, 0
    %p166 = por %p164, %p165
    %p167 = scmp.ne.s32.totalorder %s155, %s156
    %p168 = scmp.eq.s32.totalorder %s20, 1
    %p169 = por %p167, %p168
    %p171 = scmp.ne.s32.totalorder %s156, %s170
    %p172 = scmp.eq.s32.totalorder %s20, 0
    %p173 = por %p171, %p172
    %s175 = sadd.s32 %s174, 1
    %p178 = scmp.eq.s32.totalorder %s14, 1
    %p179 = scmp.ne.s32.totalorder %s174, %s176
    %p180 = scmp.eq.s32.totalorder %s14, 0
    %p181 = por %p179, %p180
    %p182 = scmp.ne.s32.totalorder %s174, %s176
    %p183 = scmp.eq.s32.totalorder %s19, 1
    %p184 = por %p182, %p183
    %p185 = scmp.ne.s32.totalorder %s176, %s177
    %p186 = scmp.eq.s32.totalorder %s19, 0
    %p187 = por %p185, %p186
    %p188 = scmp.ne.s32.totalorder %s176, %s177
    %p189 = scmp.eq.s32.totalorder %s20, 1
    %p190 = por %p188, %p189
    %p192 = scmp.ne.s32.totalorder %s177, %s191
    %p193 = scmp.eq.s32.totalorder %s20, 0
    %p194 = por %p192, %p193
    %s195 = ssub.s32 %s14, %s21
    %p196 = scmp.eq.s32.totalorder %s195, 0
    %s198 = sadd.s32 %s197, 1
    %s199 = scalar_select %p196, %s197, %s198
    %p202 = pneg %p196
    %p203 = scmp.eq.s32.totalorder %s14, 1
    %p204 = por %p202, %p203
    %p205 = scmp.ne.s32.totalorder %s197, %s200
    %p206 = scmp.eq.s32.totalorder %s14, 0
    %p207 = por %p205, %p206
    %p208 = scmp.ne.s32.totalorder %s197, %s200
    %p209 = scmp.eq.s32.totalorder %s19, 1
    %p210 = por %p208, %p209
    %p211 = scmp.ne.s32.totalorder %s200, %s201
    %p212 = scmp.eq.s32.totalorder %s19, 0
    %p213 = por %p211, %p212
    %p214 = scmp.ne.s32.totalorder %s200, %s201
    %p215 = scmp.eq.s32.totalorder %s20, 1
    %p216 = por %p214, %p215
    %p218 = scmp.ne.s32.totalorder %s201, %s217
    %p219 = scmp.eq.s32.totalorder %s20, 0
    %p220 = por %p218, %p219
    %p221 = scmp.le.s32.totalorder 1, %s14
    %p222 = scmp.lt.s32.totalorder %s14, 3
    %p223 = pnand %p221, %p222
    %p224 = pneg %p223
    // Predicated region
    $region9: #{tpu_custom_call.1} parent=5 // pred_check
      _
    $region10: #{tpu_custom_call.1} parent=5 // pred_check_branch
      %226 = sbr.rel (%p223) target = $region12
    $region11: #{tpu_custom_call.1} parent=5 // pred_region
      %s227 = ssub.s32 %s14, 1
      // Predicated region
      $region13: #{tpu_custom_call.1} parent=11 // pred_check
        %p228 = pneg %p61
      $region14: #{tpu_custom_call.1} parent=11 // pred_check_branch
        %230 = sbr.rel (%p228) target = $region16
      $region15: #{tpu_custom_call.1} parent=11 // pred_region
        _
      $region16: #{tpu_custom_call.1} parent=11 // pred_fallthru
        _
      // Predicated region
      $region17: #{tpu_custom_call.1} parent=11 // pred_check
        %p231 = pneg %p82
      $region18: #{tpu_custom_call.1} parent=11 // pred_check_branch
        %233 = sbr.rel (%p231) target = $region20
      $region19: #{tpu_custom_call.1} parent=11 // pred_region
        _
      $region20: #{tpu_custom_call.1} parent=11 // pred_fallthru
        _
      // Predicated region
      $region21: #{tpu_custom_call.1} parent=11 // pred_check
        %p234 = pneg %p103
      $region22: #{tpu_custom_call.1} parent=11 // pred_check_branch
        %236 = sbr.rel (%p234) target = $region24
      $region23: #{tpu_custom_call.1} parent=11 // pred_region
        _
      $region24: #{tpu_custom_call.1} parent=11 // pred_fallthru
        _
      // Predicated region
      $region25: #{tpu_custom_call.1} parent=11 // pred_check
        %p237 = pneg %p124
      $region26: #{tpu_custom_call.1} parent=11 // pred_check_branch
        %239 = sbr.rel (%p237) target = $region28
      $region27: #{tpu_custom_call.1} parent=11 // pred_region
        _
      $region28: #{tpu_custom_call.1} parent=11 // pred_fallthru
        _
      // Predicated region
      $region29: #{tpu_custom_call.1} parent=11 // pred_check
        %p240 = pneg %p145
      $region30: #{tpu_custom_call.1} parent=11 // pred_check_branch
        %242 = sbr.rel (%p240) target = $region32
      $region31: #{tpu_custom_call.1} parent=11 // pred_region
        _
      $region32: #{tpu_custom_call.1} parent=11 // pred_fallthru
        _
      // Predicated region
      $region33: #{tpu_custom_call.1} parent=11 // pred_check
        %p243 = pneg %p166
      $region34: #{tpu_custom_call.1} parent=11 // pred_check_branch
        %245 = sbr.rel (%p243) target = $region36
      $region35: #{tpu_custom_call.1} parent=11 // pred_region
        _
      $region36: #{tpu_custom_call.1} parent=11 // pred_fallthru
        _
      // Predicated region
      $region37: #{tpu_custom_call.1} parent=11 // pred_check
        %p246 = pneg %p187
      $region38: #{tpu_custom_call.1} parent=11 // pred_check_branch
        %248 = sbr.rel (%p246) target = $region40
      $region39: #{tpu_custom_call.1} parent=11 // pred_region
        _
      $region40: #{tpu_custom_call.1} parent=11 // pred_fallthru
        _
    $region12: #{tpu_custom_call.1} parent=5 // pred_fallthru
      _
    %p249 = scmp.lt.s32.totalorder %s14, 2
    // Predicated region
    $region41: #{tpu_custom_call.1} parent=5 // pred_check
      %p250 = pneg %p249
    $region42: #{tpu_custom_call.1} parent=5 // pred_check_branch
      %252 = sbr.rel (%p250) target = $region44
    $region43: #{tpu_custom_call.1} parent=5 // pred_region
      // Predicated region
      $region45: #{tpu_custom_call.1} parent=43 // pred_check
        %p253 = pneg %p34
      $region46: #{tpu_custom_call.1} parent=43 // pred_check_branch
        %255 = sbr.rel (%p253) target = $region48
      $region47: #{tpu_custom_call.1} parent=43 // pred_region
        %p256 = scmp.lt.s32.totalorder %s14, 1
        %s257 = scalar_select %p256, %s14, 1
        %s258 = smul.addr %s257, 32
        %s259 = smul.addr %s258, 8
        %s260 = scalar_lea.vmem %s0, %s259
      $region48: #{tpu_custom_call.1} parent=43 // pred_fallthru
        _
    $region44: #{tpu_custom_call.1} parent=5 // pred_fallthru
      _
    %p261 = scmp.le.s32.totalorder 1, %s14
    %p262 = scmp.lt.s32.totalorder %s14, 3
    %p263 = pnand %p261, %p262
    %p264 = pneg %p263
    // Predicated region
    $region49: #{tpu_custom_call.1} parent=5 // pred_check
      _
    $region50: #{tpu_custom_call.1} parent=5 // pred_check_branch
      %266 = sbr.rel (%p263) target = $region52
    $region51: #{tpu_custom_call.1} parent=5 // pred_region
      %s267 = ssub.s32 %s14, 1
      %p268 = scmp.lt.s32.totalorder %s19, 1
      %s269 = scalar_select %p268, %s19, 1
      %s270 = smul.addr %s269, 32
      %s271 = smul.addr %s270, 8
      %s272 = scalar_lea.vmem %s0, %s271
      %p273 = pneg %p40
      %p274 = pneg %p37
      %p275 = pneg %p61
      %p276 = pneg %p58
      %p277 = pneg %p82
      %p278 = pneg %p79
      %p279 = pneg %p103
      %p280 = pneg %p100
      %p281 = pneg %p124
      %p282 = pneg %p121
      %p283 = pneg %p145
      %p284 = pneg %p142
      %p285 = pneg %p166
      %p286 = pneg %p163
      %p287 = pneg %p187
      %p288 = pneg %p184
      %p289 = pneg %p213
      %p290 = pneg %p210
      %p291 = scmp.lt.s32.totalorder %s19, 1
      %s292 = scalar_select %p291, %s19, 1
      %s293 = smul.addr %s292, 4
      %s294 = scalar_lea.vmem %s8, %s293
      %p295 = scmp.lt.s32.totalorder %s19, 1
      %s296 = scalar_select %p295, %s19, 1
      %s297 = smul.addr %s296, 32
      %s298 = smul.addr %s297, 8
      %s299 = scalar_lea.vmem %s0, %s298
      %p300 = scmp.lt.s32.totalorder %s19, 1
      %s301 = scalar_select %p300, %s19, 1
      %s302 = smul.addr %s301, 4
      %s303 = scalar_lea.vmem %s8, %s302
      %v304 = vld [vmem:[%s299] sm:$0xff]
      %v305 = vld [vmem:[%s299 + $0x8] sm:$0xff]
      %v306 = vld [vmem:[%s299 + $0x10] sm:$0xff]
      %v307 = vld [vmem:[%s299 + $0x18] sm:$0xff]
      %v308 = vld [vmem:[%s299 + $0x20] sm:$0xff]
      %v309 = vld [vmem:[%s299 + $0x28] sm:$0xff]
      %v310 = vld [vmem:[%s299 + $0x30] sm:$0xff]
      %v311 = vld [vmem:[%s299 + $0x38] sm:$0xff]
      %v312 = vld [vmem:[%s299 + $0x40] sm:$0xff]
      %v313 = vld [vmem:[%s299 + $0x48] sm:$0xff]
      %v314 = vld [vmem:[%s299 + $0x50] sm:$0xff]
      %v315 = vld [vmem:[%s299 + $0x58] sm:$0xff]
      %v316 = vld [vmem:[%s299 + $0x60] sm:$0xff]
      %v317 = vld [vmem:[%s299 + $0x68] sm:$0xff]
      %v318 = vld [vmem:[%s299 + $0x70] sm:$0xff]
      %v319 = vld [vmem:[%s299 + $0x78] sm:$0xff]
      %v320 = vld [vmem:[%s299 + $0x80] sm:$0xff]
      %v321 = vld [vmem:[%s299 + $0x88] sm:$0xff]
      %v322 = vld [vmem:[%s299 + $0x90] sm:$0xff]
      %v323 = vld [vmem:[%s299 + $0x98] sm:$0xff]
      %v324 = vld [vmem:[%s299 + $0xa0] sm:$0xff]
      %v325 = vld [vmem:[%s299 + $0xa8] sm:$0xff]
      %v326 = vld [vmem:[%s299 + $0xb0] sm:$0xff]
      %v327 = vld [vmem:[%s299 + $0xb8] sm:$0xff]
      %v328 = vld [vmem:[%s299 + $0xc0] sm:$0xff]
      %v329 = vld [vmem:[%s299 + $0xc8] sm:$0xff]
      %v330 = vld [vmem:[%s299 + $0xd0] sm:$0xff]
      %v331 = vld [vmem:[%s299 + $0xd8] sm:$0xff]
      %v332 = vld [vmem:[%s299 + $0xe0] sm:$0xff]
      %v333 = vld [vmem:[%s299 + $0xe8] sm:$0xff]
      %v334 = vld [vmem:[%s299 + $0xf0] sm:$0xff]
      %v335 = vld [vmem:[%s299 + $0xf8] sm:$0xff]
      %v336 = vld [vmem:[%s1] sm:$0xff]
      %v337 = vld [vmem:[%s1 + $0x8] sm:$0xff]
      %v338 = vld [vmem:[%s1 + $0x10] sm:$0xff]
      %v339 = vld [vmem:[%s1 + $0x18] sm:$0xff]
      %v340 = vld [vmem:[%s1 + $0x20] sm:$0xff]
      %v341 = vld [vmem:[%s1 + $0x28] sm:$0xff]
      %v342 = vld [vmem:[%s1 + $0x30] sm:$0xff]
      %v343 = vld [vmem:[%s1 + $0x38] sm:$0xff]
      %v344 = vld [vmem:[%s1 + $0x40] sm:$0xff]
      %v345 = vld [vmem:[%s1 + $0x48] sm:$0xff]
      %v346 = vld [vmem:[%s1 + $0x50] sm:$0xff]
      %v347 = vld [vmem:[%s1 + $0x58] sm:$0xff]
      %v348 = vld [vmem:[%s1 + $0x60] sm:$0xff]
      %v349 = vld [vmem:[%s1 + $0x68] sm:$0xff]
      %v350 = vld [vmem:[%s1 + $0x70] sm:$0xff]
      %v351 = vld [vmem:[%s1 + $0x78] sm:$0xff]
      %v352 = vld [vmem:[%s1 + $0x80] sm:$0xff]
      %v353 = vld [vmem:[%s1 + $0x88] sm:$0xff]
      %v354 = vld [vmem:[%s1 + $0x90] sm:$0xff]
      %v355 = vld [vmem:[%s1 + $0x98] sm:$0xff]
      %v356 = vld [vmem:[%s1 + $0xa0] sm:$0xff]
      %v357 = vld [vmem:[%s1 + $0xa8] sm:$0xff]
      %v358 = vld [vmem:[%s1 + $0xb0] sm:$0xff]
      %v359 = vld [vmem:[%s1 + $0xb8] sm:$0xff]
      %v360 = vld [vmem:[%s1 + $0xc0] sm:$0xff]
      %v361 = vld [vmem:[%s1 + $0xc8] sm:$0xff]
      %v362 = vld [vmem:[%s1 + $0xd0] sm:$0xff]
      %v363 = vld [vmem:[%s1 + $0xd8] sm:$0xff]
      %v364 = vld [vmem:[%s1 + $0xe0] sm:$0xff]
      %v365 = vld [vmem:[%s1 + $0xe8] sm:$0xff]
      %v366 = vld [vmem:[%s1 + $0xf0] sm:$0xff]
      %v367 = vld [vmem:[%s1 + $0xf8] sm:$0xff]
      %v368 = vld [vmem:[%s1 + $0x100] sm:$0xff]
      %v369 = vld [vmem:[%s1 + $0x108] sm:$0xff]
      %v370 = vld [vmem:[%s1 + $0x110] sm:$0xff]
      %v371 = vld [vmem:[%s1 + $0x118] sm:$0xff]
      %v372 = vld [vmem:[%s1 + $0x120] sm:$0xff]
      %v373 = vld [vmem:[%s1 + $0x128] sm:$0xff]
      %v374 = vld [vmem:[%s1 + $0x130] sm:$0xff]
      %v375 = vld [vmem:[%s1 + $0x138] sm:$0xff]
      %v376 = vld [vmem:[%s1 + $0x140] sm:$0xff]
      %v377 = vld [vmem:[%s1 + $0x148] sm:$0xff]
      %v378 = vld [vmem:[%s1 + $0x150] sm:$0xff]
      %v379 = vld [vmem:[%s1 + $0x158] sm:$0xff]
      %v380 = vld [vmem:[%s1 + $0x160] sm:$0xff]
      %v381 = vld [vmem:[%s1 + $0x168] sm:$0xff]
      %v382 = vld [vmem:[%s1 + $0x170] sm:$0xff]
      %v383 = vld [vmem:[%s1 + $0x178] sm:$0xff]
      %v384 = vld [vmem:[%s1 + $0x180] sm:$0xff]
      %v385 = vld [vmem:[%s1 + $0x188] sm:$0xff]
      %v386 = vld [vmem:[%s1 + $0x190] sm:$0xff]
      %v387 = vld [vmem:[%s1 + $0x198] sm:$0xff]
      %v388 = vld [vmem:[%s1 + $0x1a0] sm:$0xff]
      %v389 = vld [vmem:[%s1 + $0x1a8] sm:$0xff]
      %v390 = vld [vmem:[%s1 + $0x1b0] sm:$0xff]
      %v391 = vld [vmem:[%s1 + $0x1b8] sm:$0xff]
      %v392 = vld [vmem:[%s1 + $0x1c0] sm:$0xff]
      %v393 = vld [vmem:[%s1 + $0x1c8] sm:$0xff]
      %v394 = vld [vmem:[%s1 + $0x1d0] sm:$0xff]
      %v395 = vld [vmem:[%s1 + $0x1d8] sm:$0xff]
      %v396 = vld [vmem:[%s1 + $0x1e0] sm:$0xff]
      %v397 = vld [vmem:[%s1 + $0x1e8] sm:$0xff]
      %v398 = vld [vmem:[%s1 + $0x1f0] sm:$0xff]
      %v399 = vld [vmem:[%s1 + $0x1f8] sm:$0xff]
      %400 = vmatprep.subr.mxu0 0.0
      %401 = vmatpush1.msra.mxu0 %v304
      %402 = vmatprep.subr.mxu0 0.0
      %403 = vmatpush1.msra.mxu0 %v305
      %404 = vmatprep.subr.mxu0 0.0
      %405 = vmatpush1.msra.mxu0 %v306
      %406 = vmatprep.subr.mxu0 0.0
      %407 = vmatpush1.msra.mxu0 %v307
      %408 = vmatprep.subr.mxu0 0.0
      %409 = vmatpush1.msra.mxu0 %v308
      %410 = vmatprep.subr.mxu0 0.0
      %411 = vmatpush1.msra.mxu0 %v309
      %412 = vmatprep.subr.mxu0 0.0
      %413 = vmatpush1.msra.mxu0 %v310
      %414 = vmatprep.subr.mxu0 0.0
      %415 = vmatpush1.msra.mxu0 %v311
      %416 = vmatprep.subr.mxu0 0.0
      %417 = vmatpush1.msra.mxu0 %v312
      %418 = vmatprep.subr.mxu0 0.0
      %419 = vmatpush1.msra.mxu0 %v313
      %420 = vmatprep.subr.mxu0 0.0
      %421 = vmatpush1.msra.mxu0 %v314
      %422 = vmatprep.subr.mxu0 0.0
      %423 = vmatpush1.msra.mxu0 %v315
      %424 = vmatprep.subr.mxu0 0.0
      %425 = vmatpush1.msra.mxu0 %v316
      %426 = vmatprep.subr.mxu0 0.0
      %427 = vmatpush1.msra.mxu0 %v317
      %428 = vmatprep.subr.mxu0 0.0
      %429 = vmatpush1.msra.mxu0 %v318
      %430 = vmatprep.subr.mxu0 0.0
      %431 = vmatpush1.msra.mxu0 %v319
      %432 = vmatprep.subr.mxu0 0.0
      %433 = vmatpush1.msra.mxu0 %v320
      %434 = vmatprep.subr.mxu0 0.0
      %435 = vmatpush1.msra.mxu0 %v321
      %436 = vmatprep.subr.mxu0 0.0
      %437 = vmatpush1.msra.mxu0 %v322
      %438 = vmatprep.subr.mxu0 0.0
      %439 = vmatpush1.msra.mxu0 %v323
      %440 = vmatprep.subr.mxu0 0.0
      %441 = vmatpush1.msra.mxu0 %v324
      %442 = vmatprep.subr.mxu0 0.0
      %443 = vmatpush1.msra.mxu0 %v325
      %444 = vmatprep.subr.mxu0 0.0
      %445 = vmatpush1.msra.mxu0 %v326
      %446 = vmatprep.subr.mxu0 0.0
      %447 = vmatpush1.msra.mxu0 %v327
      %448 = vmatprep.subr.mxu0 0.0
      %449 = vmatpush1.msra.mxu0 %v328
      %450 = vmatprep.subr.mxu0 0.0
      %451 = vmatpush1.msra.mxu0 %v329
      %452 = vmatprep.subr.mxu0 0.0
      %453 = vmatpush1.msra.mxu0 %v330
      %454 = vmatprep.subr.mxu0 0.0
      %455 = vmatpush1.msra.mxu0 %v331
      %456 = vmatprep.subr.mxu0 0.0
      %457 = vmatpush1.msra.mxu0 %v332
      %458 = vmatprep.subr.mxu0 0.0
      %459 = vmatpush1.msra.mxu0 %v333
      %460 = vmatprep.subr.mxu0 0.0
      %461 = vmatpush1.msra.mxu0 %v334
      %462 = vmatprep.subr.mxu0 0.0
      %463 = vmatpush1.msra.mxu0 %v335
      %464 = vmatprep.mubr.f32.mxu0 %v337
      %465 = vmatmul.mubr.f32.gmra.mrb[0].mxu0 %v336
      %v466 = vpop.f32.mrb[0].mxu0
      %v467 = vadd.f32 0.0, %v466
      %v468 = vpop.f32.mrb[0].mxu0
      %469 = vmatprep.mubr.f32.mxu0 %v339
      %470 = vmatmul.mubr.f32.gmra.mrb[0].mxu0 %v338
      %v471 = vpop.f32.mrb[0].mxu0
      %v472 = vadd.f32 0.0, %v471
      %v473 = vpop.f32.mrb[0].mxu0
      %474 = vmatprep.mubr.f32.mxu0 %v341
      %475 = vmatmul.mubr.f32.gmra.mrb[0].mxu0 %v340
      %v476 = vpop.f32.mrb[0].mxu0
      %v477 = vadd.f32 0.0, %v476
      %v478 = vpop.f32.mrb[0].mxu0
      %479 = vmatprep.mubr.f32.mxu0 %v343
      %480 = vmatmul.mubr.f32.gmra.mrb[0].mxu0 %v342
      %v481 = vpop.f32.mrb[0].mxu0
      %v482 = vadd.f32 0.0, %v481
      %v483 = vpop.f32.mrb[0].mxu0
      %484 = vmatprep.mubr.f32.mxu0 %v345
      %485 = vmatmul.mubr.f32.gmra.mrb[0].mxu0 %v344
      %v486 = vpop.f32.mrb[0].mxu0
      %v487 = vadd.f32 0.0, %v486
      %v488 = vpop.f32.mrb[0].mxu0
      %489 = vmatprep.mubr.f32.mxu0 %v347
      %490 = vmatmul.mubr.f32.gmra.mrb[0].mxu0 %v346
      %v491 = vpop.f32.mrb[0].mxu0
      %v492 = vadd.f32 0.0, %v491
      %v493 = vpop.f32.mrb[0].mxu0
      %494 = vmatprep.mubr.f32.mxu0 %v349
      %495 = vmatmul.mubr.f32.gmra.mrb[0].mxu0 %v348
      %v496 = vpop.f32.mrb[0].mxu0
      %v497 = vadd.f32 0.0, %v496
      %v498 = vpop.f32.mrb[0].mxu0
      %499 = vmatprep.mubr.f32.mxu0 %v351
      %500 = vmatmul.mubr.f32.gmra.mrb[0].mxu0 %v350
      %v501 = vpop.f32.mrb[0].mxu0
      %v502 = vadd.f32 0.0, %v501
      %v503 = vpop.f32.mrb[0].mxu0
      %504 = vmatprep.mubr.f32.mxu0 %v353
      %505 = vmatmul.mubr.f32.gmra.mrb[0].mxu0 %v352
      %v506 = vpop.f32.mrb[0].mxu0
      %v507 = vadd.f32 0.0, %v506
      %v508 = vpop.f32.mrb[0].mxu0
      %509 = vmatprep.mubr.f32.mxu0 %v355
      %510 = vmatmul.mubr.f32.gmra.mrb[0].mxu0 %v354
      %v511 = vpop.f32.mrb[0].mxu0
      %v512 = vadd.f32 0.0, %v511
      %v513 = vpop.f32.mrb[0].mxu0
      %514 = vmatprep.mubr.f32.mxu0 %v357
      %515 = vmatmul.mubr.f32.gmra.mrb[0].mxu0 %v356
      %v516 = vpop.f32.mrb[0].mxu0
      %v517 = vadd.f32 0.0, %v516
      %v518 = vpop.f32.mrb[0].mxu0
      %519 = vmatprep.mubr.f32.mxu0 %v359
      %520 = vmatmul.mubr.f32.gmra.mrb[0].mxu0 %v358
      %v521 = vpop.f32.mrb[0].mxu0
      %v522 = vadd.f32 0.0, %v521
      %v523 = vpop.f32.mrb[0].mxu0
      %524 = vmatprep.mubr.f32.mxu0 %v361
      %525 = vmatmul.mubr.f32.gmra.mrb[0].mxu0 %v360
      %v526 = vpop.f32.mrb[0].mxu0
      %v527 = vadd.f32 0.0, %v526
      %v528 = vpop.f32.mrb[0].mxu0
      %529 = vmatprep.mubr.f32.mxu0 %v363
      %530 = vmatmul.mubr.f32.gmra.mrb[0].mxu0 %v362
      %v531 = vpop.f32.mrb[0].mxu0
      %v532 = vadd.f32 0.0, %v531
      %v533 = vpop.f32.mrb[0].mxu0
      %534 = vmatprep.mubr.f32.mxu0 %v365
      %535 = vmatmul.mubr.f32.gmra.mrb[0].mxu0 %v364
      %v536 = vpop.f32.mrb[0].mxu0
      %v537 = vadd.f32 0.0, %v536
      %v538 = vpop.f32.mrb[0].mxu0
      %539 = vmatprep.mubr.f32.mxu0 %v367
      %540 = vmatmul.mubr.f32.gmra.mrb[0].mxu0 %v366
      %v541 = vpop.f32.mrb[0].mxu0
      %v542 = vadd.f32 0.0, %v541
      %v543 = vpop.f32.mrb[0].mxu0
      %544 = vmatprep.mubr.f32.mxu0 %v369
      %545 = vmatmul.mubr.f32.gmra.mrb[0].mxu0 %v368
      %v546 = vpop.f32.mrb[0].mxu0
      %v547 = vadd.f32 0.0, %v546
      %v548 = vpop.f32.mrb[0].mxu0
      %549 = vmatprep.mubr.f32.mxu0 %v371
      %550 = vmatmul.mubr.f32.gmra.mrb[0].mxu0 %v370
      %v551 = vpop.f32.mrb[0].mxu0
      %v552 = vadd.f32 0.0, %v551
      %v553 = vpop.f32.mrb[0].mxu0
      %554 = vmatprep.mubr.f32.mxu0 %v373
      %555 = vmatmul.mubr.f32.gmra.mrb[0].mxu0 %v372
      %v556 = vpop.f32.mrb[0].mxu0
      %v557 = vadd.f32 0.0, %v556
      %v558 = vpop.f32.mrb[0].mxu0
      %559 = vmatprep.mubr.f32.mxu0 %v375
      %560 = vmatmul.mubr.f32.gmra.mrb[0].mxu0 %v374
      %v561 = vpop.f32.mrb[0].mxu0
      %v562 = vadd.f32 0.0, %v561
      %v563 = vpop.f32.mrb[0].mxu0
      %564 = vmatprep.mubr.f32.mxu0 %v377
      %565 = vmatmul.mubr.f32.gmra.mrb[0].mxu0 %v376
      %v566 = vpop.f32.mrb[0].mxu0
      %v567 = vadd.f32 0.0, %v566
      %v568 = vpop.f32.mrb[0].mxu0
      %569 = vmatprep.mubr.f32.mxu0 %v379
      %570 = vmatmul.mubr.f32.gmra.mrb[0].mxu0 %v378
      %v571 = vpop.f32.mrb[0].mxu0
      %v572 = vadd.f32 0.0, %v571
      %v573 = vpop.f32.mrb[0].mxu0
      %574 = vmatprep.mubr.f32.mxu0 %v381
      %575 = vmatmul.mubr.f32.gmra.mrb[0].mxu0 %v380
      %v576 = vpop.f32.mrb[0].mxu0
      %v577 = vadd.f32 0.0, %v576
      %v578 = vpop.f32.mrb[0].mxu0
      %579 = vmatprep.mubr.f32.mxu0 %v383
      %580 = vmatmul.mubr.f32.gmra.mrb[0].mxu0 %v382
      %v581 = vpop.f32.mrb[0].mxu0
      %v582 = vadd.f32 0.0, %v581
      %v583 = vpop.f32.mrb[0].mxu0
      %584 = vmatprep.mubr.f32.mxu0 %v385
      %585 = vmatmul.mubr.f32.gmra.mrb[0].mxu0 %v384
      %v586 = vpop.f32.mrb[0].mxu0
      %v587 = vadd.f32 0.0, %v586
      %v588 = vpop.f32.mrb[0].mxu0
      %589 = vmatprep.mubr.f32.mxu0 %v387
      %590 = vmatmul.mubr.f32.gmra.mrb[0].mxu0 %v386
      %v591 = vpop.f32.mrb[0].mxu0
      %v592 = vadd.f32 0.0, %v591
      %v593 = vpop.f32.mrb[0].mxu0
      %594 = vmatprep.mubr.f32.mxu0 %v389
      %595 = vmatmul.mubr.f32.gmra.mrb[0].mxu0 %v388
      %v596 = vpop.f32.mrb[0].mxu0
      %v597 = vadd.f32 0.0, %v596
      %v598 = vpop.f32.mrb[0].mxu0
      %599 = vmatprep.mubr.f32.mxu0 %v391
      %600 = vmatmul.mubr.f32.gmra.mrb[0].mxu0 %v390
      %v601 = vpop.f32.mrb[0].mxu0
      %v602 = vadd.f32 0.0, %v601
      %v603 = vpop.f32.mrb[0].mxu0
      %604 = vmatprep.mubr.f32.mxu0 %v393
      %605 = vmatmul.mubr.f32.gmra.mrb[0].mxu0 %v392
      %v606 = vpop.f32.mrb[0].mxu0
      %v607 = vadd.f32 0.0, %v606
      %v608 = vpop.f32.mrb[0].mxu0
      %609 = vmatprep.mubr.f32.mxu0 %v395
      %610 = vmatmul.mubr.f32.gmra.mrb[0].mxu0 %v394
      %v611 = vpop.f32.mrb[0].mxu0
      %v612 = vadd.f32 0.0, %v611
      %v613 = vpop.f32.mrb[0].mxu0
      %614 = vmatprep.mubr.f32.mxu0 %v397
      %615 = vmatmul.mubr.f32.gmra.mrb[0].mxu0 %v396
      %v616 = vpop.f32.mrb[0].mxu0
      %v617 = vadd.f32 0.0, %v616
      %v618 = vpop.f32.mrb[0].mxu0
      %619 = vmatprep.mubr.f32.mxu0 %v399
      %620 = vmatmul.mubr.f32.gmra.mrb[0].mxu0 %v398
      %v621 = vpop.f32.mrb[0].mxu0
      %v622 = vadd.f32 0.0, %v621
      %v623 = vpop.f32.mrb[0].mxu0
      %624 = vdwg.mxu0
      %v625 = vld [vmem:[%s2] sm:$0xff]
      %v626 = vld [vmem:[%s2 + $0x8] sm:$0xff]
      %v627 = vld [vmem:[%s3] sm:$0x1]
      %v629 = vlaneseq
      %v630 = vshrl.u32 %v629, 7
      %v631 = vsub.s32 0, %v630
      %v632 = vrot.slane %v627, %v631
      %vm634 = vcmask 130048
      %v636 = vsel %vm634, %v467, 0
      %v639 = vsel %vm634, %v472, 0
      %v642 = vsel %vm634, %v477, 0
      %v645 = vsel %vm634, %v482, 0
      %v648 = vsel %vm634, %v487, 0
      %v651 = vsel %vm634, %v492, 0
      %v654 = vsel %vm634, %v497, 0
      %v657 = vsel %vm634, %v502, 0
      %v660 = vsel %vm634, %v507, 0
      %v663 = vsel %vm634, %v512, 0
      %v666 = vsel %vm634, %v517, 0
      %v669 = vsel %vm634, %v522, 0
      %v672 = vsel %vm634, %v527, 0
      %v675 = vsel %vm634, %v532, 0
      %v678 = vsel %vm634, %v537, 0
      %v681 = vsel %vm634, %v542, 0
      %v684 = vsel %vm634, %v547, 0
      %v687 = vsel %vm634, %v552, 0
      %v690 = vsel %vm634, %v557, 0
      %v693 = vsel %vm634, %v562, 0
      %v696 = vsel %vm634, %v567, 0
      %v699 = vsel %vm634, %v572, 0
      %v702 = vsel %vm634, %v577, 0
      %v705 = vsel %vm634, %v582, 0
      %v708 = vsel %vm634, %v587, 0
      %v711 = vsel %vm634, %v592, 0
      %v714 = vsel %vm634, %v597, 0
      %v717 = vsel %vm634, %v602, 0
      %v720 = vsel %vm634, %v607, 0
      %v723 = vsel %vm634, %v612, 0
      %v726 = vsel %vm634, %v617, 0
      %v729 = vsel %vm634, %v622, 0
      %731 = vmatprep.subr.mxu0 0.0
      %732 = vmatpush1.msra.mxu0 %v625
      %733 = vmatprep.subr.mxu0 0.0
      %734 = vmatpush1.msra.mxu0 %v626
      %735 = vmatprep.subr.mxu0 0.0
      %736 = vmatpush1.msra.mxu0 0.0
      %737 = vmatprep.subr.mxu0 0.0
      %738 = vmatpush1.msra.mxu0 0.0
      %739 = vmatprep.subr.mxu0 0.0
      %740 = vmatpush1.msra.mxu0 0.0
      %741 = vmatprep.subr.mxu0 0.0
      %742 = vmatpush1.msra.mxu0 0.0
      %743 = vmatprep.subr.mxu0 0.0
      %744 = vmatpush1.msra.mxu0 0.0
      %745 = vmatprep.subr.mxu0 0.0
      %746 = vmatpush1.msra.mxu0 0.0
      %747 = vmatprep.subr.mxu0 0.0
      %748 = vmatpush1.msra.mxu0 0.0
      %749 = vmatprep.subr.mxu0 0.0
      %750 = vmatpush1.msra.mxu0 0.0
      %751 = vmatprep.subr.mxu0 0.0
      %752 = vmatpush1.msra.mxu0 0.0
      %753 = vmatprep.subr.mxu0 0.0
      %754 = vmatpush1.msra.mxu0 0.0
      %755 = vmatprep.subr.mxu0 0.0
      %756 = vmatpush1.msra.mxu0 0.0
      %757 = vmatprep.subr.mxu0 0.0
      %758 = vmatpush1.msra.mxu0 0.0
      %759 = vmatprep.subr.mxu0 0.0
      %760 = vmatpush1.msra.mxu0 0.0
      %761 = vmatprep.subr.mxu0 0.0
      %762 = vmatpush1.msra.mxu0 0.0
      %763 = vmatprep.subr.mxu0 0.0
      %764 = vmatpush1.msra.mxu0 0.0
      %765 = vmatprep.subr.mxu0 0.0
      %766 = vmatpush1.msra.mxu0 0.0
      %767 = vmatprep.subr.mxu0 0.0
      %768 = vmatpush1.msra.mxu0 0.0
      %769 = vmatprep.subr.mxu0 0.0
      %770 = vmatpush1.msra.mxu0 0.0
      %771 = vmatprep.subr.mxu0 0.0
      %772 = vmatpush1.msra.mxu0 0.0
      %773 = vmatprep.subr.mxu0 0.0
      %774 = vmatpush1.msra.mxu0 0.0
      %775 = vmatprep.subr.mxu0 0.0
      %776 = vmatpush1.msra.mxu0 0.0
      %777 = vmatprep.subr.mxu0 0.0
      %778 = vmatpush1.msra.mxu0 0.0
      %779 = vmatprep.subr.mxu0 0.0
      %780 = vmatpush1.msra.mxu0 0.0
      %781 = vmatprep.subr.mxu0 0.0
      %782 = vmatpush1.msra.mxu0 0.0
      %783 = vmatprep.subr.mxu0 0.0
      %784 = vmatpush1.msra.mxu0 0.0
      %785 = vmatprep.subr.mxu0 0.0
      %786 = vmatpush1.msra.mxu0 0.0
      %787 = vmatprep.subr.mxu0 0.0
      %788 = vmatpush1.msra.mxu0 0.0
      %789 = vmatprep.subr.mxu0 0.0
      %790 = vmatpush1.msra.mxu0 0.0
      %791 = vmatprep.subr.mxu0 0.0
      %792 = vmatpush1.msra.mxu0 0.0
      %793 = vmatprep.subr.mxu0 0.0
      %794 = vmatpush1.msra.mxu0 0.0
      %795 = vmatprep.mubr.f32.mxu0 0.0
      %796 = vmatmul.mubr.f32.gmra.mrb[0].mxu0 %v636
      %v797 = vpop.f32.mrb[0].mxu0
      %v798 = vadd.f32 %v632, %v797
      %v799 = vpop.f32.mrb[0].mxu0
      %800 = vmatprep.mubr.f32.mxu0 0.0
      %801 = vmatmul.mubr.f32.gmra.mrb[0].mxu0 %v639
      %v802 = vpop.f32.mrb[0].mxu0
      %v803 = vadd.f32 %v632, %v802
      %v804 = vpop.f32.mrb[0].mxu0
      %805 = vmatprep.mubr.f32.mxu0 0.0
      %806 = vmatmul.mubr.f32.gmra.mrb[0].mxu0 %v642
      %v807 = vpop.f32.mrb[0].mxu0
      %v808 = vadd.f32 %v632, %v807
      %v809 = vpop.f32.mrb[0].mxu0
      %810 = vmatprep.mubr.f32.mxu0 0.0
      %811 = vmatmul.mubr.f32.gmra.mrb[0].mxu0 %v645
      %v812 = vpop.f32.mrb[0].mxu0
      %v813 = vadd.f32 %v632, %v812
      %v814 = vpop.f32.mrb[0].mxu0
      %815 = vmatprep.mubr.f32.mxu0 0.0
      %816 = vmatmul.mubr.f32.gmra.mrb[0].mxu0 %v648
      %v817 = vpop.f32.mrb[0].mxu0
      %v818 = vadd.f32 %v632, %v817
      %v819 = vpop.f32.mrb[0].mxu0
      %820 = vmatprep.mubr.f32.mxu0 0.0
      %821 = vmatmul.mubr.f32.gmra.mrb[0].mxu0 %v651
      %v822 = vpop.f32.mrb[0].mxu0
      %v823 = vadd.f32 %v632, %v822
      %v824 = vpop.f32.mrb[0].mxu0
      %825 = vmatprep.mubr.f32.mxu0 0.0
      %826 = vmatmul.mubr.f32.gmra.mrb[0].mxu0 %v654
      %v827 = vpop.f32.mrb[0].mxu0
      %v828 = vadd.f32 %v632, %v827
      %v829 = vpop.f32.mrb[0].mxu0
      %830 = vmatprep.mubr.f32.mxu0 0.0
      %831 = vmatmul.mubr.f32.gmra.mrb[0].mxu0 %v657
      %v832 = vpop.f32.mrb[0].mxu0
      %v833 = vadd.f32 %v632, %v832
      %v834 = vpop.f32.mrb[0].mxu0
      %835 = vmatprep.mubr.f32.mxu0 0.0
      %836 = vmatmul.mubr.f32.gmra.mrb[0].mxu0 %v660
      %v837 = vpop.f32.mrb[0].mxu0
      %v838 = vadd.f32 %v632, %v837
      %v839 = vpop.f32.mrb[0].mxu0
      %840 = vmatprep.mubr.f32.mxu0 0.0
      %841 = vmatmul.mubr.f32.gmra.mrb[0].mxu0 %v663
      %v842 = vpop.f32.mrb[0].mxu0
      %v843 = vadd.f32 %v632, %v842
      %v844 = vpop.f32.mrb[0].mxu0
      %845 = vmatprep.mubr.f32.mxu0 0.0
      %846 = vmatmul.mubr.f32.gmra.mrb[0].mxu0 %v666
      %v847 = vpop.f32.mrb[0].mxu0
      %v848 = vadd.f32 %v632, %v847
      %v849 = vpop.f32.mrb[0].mxu0
      %850 = vmatprep.mubr.f32.mxu0 0.0
      %851 = vmatmul.mubr.f32.gmra.mrb[0].mxu0 %v669
      %v852 = vpop.f32.mrb[0].mxu0
      %v853 = vadd.f32 %v632, %v852
      %v854 = vpop.f32.mrb[0].mxu0
      %855 = vmatprep.mubr.f32.mxu0 0.0
      %856 = vmatmul.mubr.f32.gmra.mrb[0].mxu0 %v672
      %v857 = vpop.f32.mrb[0].mxu0
      %v858 = vadd.f32 %v632, %v857
      %v859 = vpop.f32.mrb[0].mxu0
      %860 = vmatprep.mubr.f32.mxu0 0.0
      %861 = vmatmul.mubr.f32.gmra.mrb[0].mxu0 %v675
      %v862 = vpop.f32.mrb[0].mxu0
      %v863 = vadd.f32 %v632, %v862
      %v864 = vpop.f32.mrb[0].mxu0
      %865 = vmatprep.mubr.f32.mxu0 0.0
      %866 = vmatmul.mubr.f32.gmra.mrb[0].mxu0 %v678
      %v867 = vpop.f32.mrb[0].mxu0
      %v868 = vadd.f32 %v632, %v867
      %v869 = vpop.f32.mrb[0].mxu0
      %870 = vmatprep.mubr.f32.mxu0 0.0
      %871 = vmatmul.mubr.f32.gmra.mrb[0].mxu0 %v681
      %v872 = vpop.f32.mrb[0].mxu0
      %v873 = vadd.f32 %v632, %v872
      %v874 = vpop.f32.mrb[0].mxu0
      %875 = vmatprep.mubr.f32.mxu0 0.0
      %876 = vmatmul.mubr.f32.gmra.mrb[0].mxu0 %v684
      %v877 = vpop.f32.mrb[0].mxu0
      %v878 = vadd.f32 %v632, %v877
      %v879 = vpop.f32.mrb[0].mxu0
      %880 = vmatprep.mubr.f32.mxu0 0.0
      %881 = vmatmul.mubr.f32.gmra.mrb[0].mxu0 %v687
      %v882 = vpop.f32.mrb[0].mxu0
      %v883 = vadd.f32 %v632, %v882
      %v884 = vpop.f32.mrb[0].mxu0
      %885 = vmatprep.mubr.f32.mxu0 0.0
      %886 = vmatmul.mubr.f32.gmra.mrb[0].mxu0 %v690
      %v887 = vpop.f32.mrb[0].mxu0
      %v888 = vadd.f32 %v632, %v887
      %v889 = vpop.f32.mrb[0].mxu0
      %890 = vmatprep.mubr.f32.mxu0 0.0
      %891 = vmatmul.mubr.f32.gmra.mrb[0].mxu0 %v693
      %v892 = vpop.f32.mrb[0].mxu0
      %v893 = vadd.f32 %v632, %v892
      %v894 = vpop.f32.mrb[0].mxu0
      %895 = vmatprep.mubr.f32.mxu0 0.0
      %896 = vmatmul.mubr.f32.gmra.mrb[0].mxu0 %v696
      %v897 = vpop.f32.mrb[0].mxu0
      %v898 = vadd.f32 %v632, %v897
      %v899 = vpop.f32.mrb[0].mxu0
      %900 = vmatprep.mubr.f32.mxu0 0.0
      %901 = vmatmul.mubr.f32.gmra.mrb[0].mxu0 %v699
      %v902 = vpop.f32.mrb[0].mxu0
      %v903 = vadd.f32 %v632, %v902
      %v904 = vpop.f32.mrb[0].mxu0
      %905 = vmatprep.mubr.f32.mxu0 0.0
      %906 = vmatmul.mubr.f32.gmra.mrb[0].mxu0 %v702
      %v907 = vpop.f32.mrb[0].mxu0
      %v908 = vadd.f32 %v632, %v907
      %v909 = vpop.f32.mrb[0].mxu0
      %910 = vmatprep.mubr.f32.mxu0 0.0
      %911 = vmatmul.mubr.f32.gmra.mrb[0].mxu0 %v705
      %v912 = vpop.f32.mrb[0].mxu0
      %v913 = vadd.f32 %v632, %v912
      %v914 = vpop.f32.mrb[0].mxu0
      %915 = vmatprep.mubr.f32.mxu0 0.0
      %916 = vmatmul.mubr.f32.gmra.mrb[0].mxu0 %v708
      %v917 = vpop.f32.mrb[0].mxu0
      %v918 = vadd.f32 %v632, %v917
      %v919 = vpop.f32.mrb[0].mxu0
      %920 = vmatprep.mubr.f32.mxu0 0.0
      %921 = vmatmul.mubr.f32.gmra.mrb[0].mxu0 %v711
      %v922 = vpop.f32.mrb[0].mxu0
      %v923 = vadd.f32 %v632, %v922
      %v924 = vpop.f32.mrb[0].mxu0
      %925 = vmatprep.mubr.f32.mxu0 0.0
      %926 = vmatmul.mubr.f32.gmra.mrb[0].mxu0 %v714
      %v927 = vpop.f32.mrb[0].mxu0
      %v928 = vadd.f32 %v632, %v927
      %v929 = vpop.f32.mrb[0].mxu0
      %930 = vmatprep.mubr.f32.mxu0 0.0
      %931 = vmatmul.mubr.f32.gmra.mrb[0].mxu0 %v717
      %v932 = vpop.f32.mrb[0].mxu0
      %v933 = vadd.f32 %v632, %v932
      %v934 = vpop.f32.mrb[0].mxu0
      %935 = vmatprep.mubr.f32.mxu0 0.0
      %936 = vmatmul.mubr.f32.gmra.mrb[0].mxu0 %v720
      %v937 = vpop.f32.mrb[0].mxu0
      %v938 = vadd.f32 %v632, %v937
      %v939 = vpop.f32.mrb[0].mxu0
      %940 = vmatprep.mubr.f32.mxu0 0.0
      %941 = vmatmul.mubr.f32.gmra.mrb[0].mxu0 %v723
      %v942 = vpop.f32.mrb[0].mxu0
      %v943 = vadd.f32 %v632, %v942
      %v944 = vpop.f32.mrb[0].mxu0
      %945 = vmatprep.mubr.f32.mxu0 0.0
      %946 = vmatmul.mubr.f32.gmra.mrb[0].mxu0 %v726
      %v947 = vpop.f32.mrb[0].mxu0
      %v948 = vadd.f32 %v632, %v947
      %v949 = vpop.f32.mrb[0].mxu0
      %950 = vmatprep.mubr.f32.mxu0 0.0
      %951 = vmatmul.mubr.f32.gmra.mrb[0].mxu0 %v729
      %v952 = vpop.f32.mrb[0].mxu0
      %v953 = vadd.f32 %v632, %v952
      %v954 = vpop.f32.mrb[0].mxu0
      %955 = vdwg.mxu0
      %v956 = vmax.f32 %v798, 0.0
      %v957 = vmax.f32 %v803, 0.0
      %v958 = vmax.f32 %v808, 0.0
      %v959 = vmax.f32 %v813, 0.0
      %v960 = vmax.f32 %v818, 0.0
      %v961 = vmax.f32 %v823, 0.0
      %v962 = vmax.f32 %v828, 0.0
      %v963 = vmax.f32 %v833, 0.0
      %v964 = vmax.f32 %v838, 0.0
      %v965 = vmax.f32 %v843, 0.0
      %v966 = vmax.f32 %v848, 0.0
      %v967 = vmax.f32 %v853, 0.0
      %v968 = vmax.f32 %v858, 0.0
      %v969 = vmax.f32 %v863, 0.0
      %v970 = vmax.f32 %v868, 0.0
      %v971 = vmax.f32 %v873, 0.0
      %v972 = vmax.f32 %v878, 0.0
      %v973 = vmax.f32 %v883, 0.0
      %v974 = vmax.f32 %v888, 0.0
      %v975 = vmax.f32 %v893, 0.0
      %v976 = vmax.f32 %v898, 0.0
      %v977 = vmax.f32 %v903, 0.0
      %v978 = vmax.f32 %v908, 0.0
      %v979 = vmax.f32 %v913, 0.0
      %v980 = vmax.f32 %v918, 0.0
      %v981 = vmax.f32 %v923, 0.0
      %v982 = vmax.f32 %v928, 0.0
      %v983 = vmax.f32 %v933, 0.0
      %v984 = vmax.f32 %v938, 0.0
      %v985 = vmax.f32 %v943, 0.0
      %v986 = vmax.f32 %v948, 0.0
      %v987 = vmax.f32 %v953, 0.0
      %1020 = vrot.lane.b32.xlu0 %v304, 16
      %v1021 = vpop.permute.xlu0 %1020
      %1022 = vrot.lane.b32.xlu0 %v305, 16
      %v1023 = vpop.permute.xlu0 %1022
      %1024 = vrot.lane.b32.xlu0 %v306, 16
      %v1025 = vpop.permute.xlu0 %1024
      %1026 = vrot.lane.b32.xlu0 %v307, 16
      %v1027 = vpop.permute.xlu0 %1026
      %1028 = vrot.lane.b32.xlu0 %v308, 16
      %v1029 = vpop.permute.xlu0 %1028
      %1030 = vrot.lane.b32.xlu0 %v309, 16
      %v1031 = vpop.permute.xlu0 %1030
      %1032 = vrot.lane.b32.xlu0 %v310, 16
      %v1033 = vpop.permute.xlu0 %1032
      %1034 = vrot.lane.b32.xlu0 %v311, 16
      %v1035 = vpop.permute.xlu0 %1034
      %1036 = vrot.lane.b32.xlu0 %v312, 16
      %v1037 = vpop.permute.xlu0 %1036
      %1038 = vrot.lane.b32.xlu0 %v313, 16
      %v1039 = vpop.permute.xlu0 %1038
      %1040 = vrot.lane.b32.xlu0 %v314, 16
      %v1041 = vpop.permute.xlu0 %1040
      %1042 = vrot.lane.b32.xlu0 %v315, 16
      %v1043 = vpop.permute.xlu0 %1042
      %1044 = vrot.lane.b32.xlu0 %v316, 16
      %v1045 = vpop.permute.xlu0 %1044
      %1046 = vrot.lane.b32.xlu0 %v317, 16
      %v1047 = vpop.permute.xlu0 %1046
      %1048 = vrot.lane.b32.xlu0 %v318, 16
      %v1049 = vpop.permute.xlu0 %1048
      %1050 = vrot.lane.b32.xlu0 %v319, 16
      %v1051 = vpop.permute.xlu0 %1050
      %1052 = vrot.lane.b32.xlu0 %v320, 16
      %v1053 = vpop.permute.xlu0 %1052
      %1054 = vrot.lane.b32.xlu0 %v321, 16
      %v1055 = vpop.permute.xlu0 %1054
      %1056 = vrot.lane.b32.xlu0 %v322, 16
      %v1057 = vpop.permute.xlu0 %1056
      %1058 = vrot.lane.b32.xlu0 %v323, 16
      %v1059 = vpop.permute.xlu0 %1058
      %1060 = vrot.lane.b32.xlu0 %v324, 16
      %v1061 = vpop.permute.xlu0 %1060
      %1062 = vrot.lane.b32.xlu0 %v325, 16
      %v1063 = vpop.permute.xlu0 %1062
      %1064 = vrot.lane.b32.xlu0 %v326, 16
      %v1065 = vpop.permute.xlu0 %1064
      %1066 = vrot.lane.b32.xlu0 %v327, 16
      %v1067 = vpop.permute.xlu0 %1066
      %1068 = vrot.lane.b32.xlu0 %v328, 16
      %v1069 = vpop.permute.xlu0 %1068
      %1070 = vrot.lane.b32.xlu0 %v329, 16
      %v1071 = vpop.permute.xlu0 %1070
      %1072 = vrot.lane.b32.xlu0 %v330, 16
      %v1073 = vpop.permute.xlu0 %1072
      %1074 = vrot.lane.b32.xlu0 %v331, 16
      %v1075 = vpop.permute.xlu0 %1074
      %1076 = vrot.lane.b32.xlu0 %v332, 16
      %v1077 = vpop.permute.xlu0 %1076
      %1078 = vrot.lane.b32.xlu0 %v333, 16
      %v1079 = vpop.permute.xlu0 %1078
      %1080 = vrot.lane.b32.xlu0 %v334, 16
      %v1081 = vpop.permute.xlu0 %1080
      %1082 = vrot.lane.b32.xlu0 %v335, 16
      %v1083 = vpop.permute.xlu0 %1082
      %v1116 = vsel %vm634, %v956, %v1021
      %v1117 = vsel %vm634, %v957, %v1023
      %v1118 = vsel %vm634, %v958, %v1025
      %v1119 = vsel %vm634, %v959, %v1027
      %v1120 = vsel %vm634, %v960, %v1029
      %v1121 = vsel %vm634, %v961, %v1031
      %v1122 = vsel %vm634, %v962, %v1033
      %v1123 = vsel %vm634, %v963, %v1035
      %v1124 = vsel %vm634, %v964, %v1037
      %v1125 = vsel %vm634, %v965, %v1039
      %v1126 = vsel %vm634, %v966, %v1041
      %v1127 = vsel %vm634, %v967, %v1043
      %v1128 = vsel %vm634, %v968, %v1045
      %v1129 = vsel %vm634, %v969, %v1047
      %v1130 = vsel %vm634, %v970, %v1049
      %v1131 = vsel %vm634, %v971, %v1051
      %v1132 = vsel %vm634, %v972, %v1053
      %v1133 = vsel %vm634, %v973, %v1055
      %v1134 = vsel %vm634, %v974, %v1057
      %v1135 = vsel %vm634, %v975, %v1059
      %v1136 = vsel %vm634, %v976, %v1061
      %v1137 = vsel %vm634, %v977, %v1063
      %v1138 = vsel %vm634, %v978, %v1065
      %v1139 = vsel %vm634, %v979, %v1067
      %v1140 = vsel %vm634, %v980, %v1069
      %v1141 = vsel %vm634, %v981, %v1071
      %v1142 = vsel %vm634, %v982, %v1073
      %v1143 = vsel %vm634, %v983, %v1075
      %v1144 = vsel %vm634, %v984, %v1077
      %v1145 = vsel %vm634, %v985, %v1079
      %v1146 = vsel %vm634, %v986, %v1081
      %v1147 = vsel %vm634, %v987, %v1083
      %v1148 = vld [vmem:[%s4] sm:$0xff]
      %v1149 = vld [vmem:[%s4 + $0x8] sm:$0xff]
      %v1150 = vld [vmem:[%s4 + $0x10] sm:$0xff]
      %v1151 = vld [vmem:[%s4 + $0x18] sm:$0xff]
      %v1152 = vld [vmem:[%s4 + $0x20] sm:$0xff]
      %v1153 = vld [vmem:[%s4 + $0x28] sm:$0xff]
      %v1154 = vld [vmem:[%s4 + $0x30] sm:$0xff]
      %v1155 = vld [vmem:[%s4 + $0x38] sm:$0xff]
      %1156 = vmatprep.subr.mxu0 0.0
      %1157 = vmatpush1.msra.mxu0 %v1116
      %1158 = vmatprep.subr.mxu0 0.0
      %1159 = vmatpush1.msra.mxu0 %v1117
      %1160 = vmatprep.subr.mxu0 0.0
      %1161 = vmatpush1.msra.mxu0 %v1118
      %1162 = vmatprep.subr.mxu0 0.0
      %1163 = vmatpush1.msra.mxu0 %v1119
      %1164 = vmatprep.subr.mxu0 0.0
      %1165 = vmatpush1.msra.mxu0 %v1120
      %1166 = vmatprep.subr.mxu0 0.0
      %1167 = vmatpush1.msra.mxu0 %v1121
      %1168 = vmatprep.subr.mxu0 0.0
      %1169 = vmatpush1.msra.mxu0 %v1122
      %1170 = vmatprep.subr.mxu0 0.0
      %1171 = vmatpush1.msra.mxu0 %v1123
      %1172 = vmatprep.subr.mxu0 0.0
      %1173 = vmatpush1.msra.mxu0 %v1124
      %1174 = vmatprep.subr.mxu0 0.0
      %1175 = vmatpush1.msra.mxu0 %v1125
      %1176 = vmatprep.subr.mxu0 0.0
      %1177 = vmatpush1.msra.mxu0 %v1126
      %1178 = vmatprep.subr.mxu0 0.0
      %1179 = vmatpush1.msra.mxu0 %v1127
      %1180 = vmatprep.subr.mxu0 0.0
      %1181 = vmatpush1.msra.mxu0 %v1128
      %1182 = vmatprep.subr.mxu0 0.0
      %1183 = vmatpush1.msra.mxu0 %v1129
      %1184 = vmatprep.subr.mxu0 0.0
      %1185 = vmatpush1.msra.mxu0 %v1130
      %1186 = vmatprep.subr.mxu0 0.0
      %1187 = vmatpush1.msra.mxu0 %v1131
      %1188 = vmatprep.subr.mxu0 0.0
      %1189 = vmatpush1.msra.mxu0 %v1132
      %1190 = vmatprep.subr.mxu0 0.0
      %1191 = vmatpush1.msra.mxu0 %v1133
      %1192 = vmatprep.subr.mxu0 0.0
      %1193 = vmatpush1.msra.mxu0 %v1134
      %1194 = vmatprep.subr.mxu0 0.0
      %1195 = vmatpush1.msra.mxu0 %v1135
      %1196 = vmatprep.subr.mxu0 0.0
      %1197 = vmatpush1.msra.mxu0 %v1136
      %1198 = vmatprep.subr.mxu0 0.0
      %1199 = vmatpush1.msra.mxu0 %v1137
      %1200 = vmatprep.subr.mxu0 0.0
      %1201 = vmatpush1.msra.mxu0 %v1138
      %1202 = vmatprep.subr.mxu0 0.0
      %1203 = vmatpush1.msra.mxu0 %v1139
      %1204 = vmatprep.subr.mxu0 0.0
      %1205 = vmatpush1.msra.mxu0 %v1140
      %1206 = vmatprep.subr.mxu0 0.0
      %1207 = vmatpush1.msra.mxu0 %v1141
      %1208 = vmatprep.subr.mxu0 0.0
      %1209 = vmatpush1.msra.mxu0 %v1142
      %1210 = vmatprep.subr.mxu0 0.0
      %1211 = vmatpush1.msra.mxu0 %v1143
      %1212 = vmatprep.subr.mxu0 0.0
      %1213 = vmatpush1.msra.mxu0 %v1144
      %1214 = vmatprep.subr.mxu0 0.0
      %1215 = vmatpush1.msra.mxu0 %v1145
      %1216 = vmatprep.subr.mxu0 0.0
      %1217 = vmatpush1.msra.mxu0 %v1146
      %1218 = vmatprep.subr.mxu0 0.0
      %1219 = vmatpush1.msra.mxu0 %v1147
      %1220 = vmatprep.mubr.f32.mxu0 %v1149
      %1221 = vmatmul.mubr.f32.gmra.mrb[0].mxu0 %v1148
      %v1222 = vpop.f32.mrb[0].mxu0
      %v1223 = vadd.f32 0.0, %v1222
      %v1224 = vpop.f32.mrb[0].mxu0
      %1225 = vmatprep.mubr.f32.mxu0 %v1151
      %1226 = vmatmul.mubr.f32.gmra.mrb[0].mxu0 %v1150
      %v1227 = vpop.f32.mrb[0].mxu0
      %v1228 = vadd.f32 0.0, %v1227
      %v1229 = vpop.f32.mrb[0].mxu0
      %1230 = vmatprep.mubr.f32.mxu0 %v1153
      %1231 = vmatmul.mubr.f32.gmra.mrb[0].mxu0 %v1152
      %v1232 = vpop.f32.mrb[0].mxu0
      %v1233 = vadd.f32 0.0, %v1232
      %v1234 = vpop.f32.mrb[0].mxu0
      %1235 = vmatprep.mubr.f32.mxu0 %v1155
      %1236 = vmatmul.mubr.f32.gmra.mrb[0].mxu0 %v1154
      %v1237 = vpop.f32.mrb[0].mxu0
      %v1238 = vadd.f32 0.0, %v1237
      %v1239 = vpop.f32.mrb[0].mxu0
      %1240 = vdwg.mxu0
      %vm1245 = vcmask 1046528
      %v1246 = vrot.slane %v1223, 1
      %v1247 = vrot.slane %v1228, 1
      %v1248 = vsel %vm1245, %v1246, %v1247
      %v1249 = vrot.slane %v1233, 1
      %v1250 = vsel %vm1245, %v1247, %v1249
      %v1251 = vrot.slane %v1238, 1
      %v1252 = vsel %vm1245, %v1249, %v1251
      %1253 = vrot.lane.b32.xlu0 %v1248, 32
      %v1254 = vpop.permute.xlu0 %1253
      %1255 = vrot.lane.b32.xlu0 %v1250, 32
      %v1256 = vpop.permute.xlu0 %1255
      %1257 = vrot.lane.b32.xlu0 %v1252, 32
      %v1258 = vpop.permute.xlu0 %1257
      %1259 = vrot.lane.b32.xlu0 %v1251, 32
      %v1260 = vpop.permute.xlu0 %1259
      %vm1265 = vcmask 1045504
      %v1266 = vrot.slane %v1223, 2
      %v1267 = vrot.slane %v1228, 2
      %v1268 = vsel %vm1265, %v1266, %v1267
      %v1269 = vrot.slane %v1233, 2
      %v1270 = vsel %vm1265, %v1267, %v1269
      %v1271 = vrot.slane %v1238, 2
      %v1272 = vsel %vm1265, %v1269, %v1271
      %1273 = vrot.lane.b32.xlu0 %v1268, 64
      %v1274 = vpop.permute.xlu0 %1273
      %1275 = vrot.lane.b32.xlu0 %v1270, 64
      %v1276 = vpop.permute.xlu0 %1275
      %1277 = vrot.lane.b32.xlu0 %v1272, 64
      %v1278 = vpop.permute.xlu0 %1277
      %1279 = vrot.lane.b32.xlu0 %v1271, 64
      %v1280 = vpop.permute.xlu0 %1279
      %vm1285 = vcmask 1044480
      %v1286 = vrot.slane %v1223, 3
      %v1287 = vrot.slane %v1228, 3
      %v1288 = vsel %vm1285, %v1286, %v1287
      %v1289 = vrot.slane %v1233, 3
      %v1290 = vsel %vm1285, %v1287, %v1289
      %v1291 = vrot.slane %v1238, 3
      %v1292 = vsel %vm1285, %v1289, %v1291
      %1293 = vrot.lane.b32.xlu0 %v1288, 96
      %v1294 = vpop.permute.xlu0 %1293
      %1295 = vrot.lane.b32.xlu0 %v1290, 96
      %v1296 = vpop.permute.xlu0 %1295
      %1297 = vrot.lane.b32.xlu0 %v1292, 96
      %v1298 = vpop.permute.xlu0 %1297
      %1299 = vrot.lane.b32.xlu0 %v1291, 96
      %v1300 = vpop.permute.xlu0 %1299
      %vm1305 = vcmask 1043456
      %v1306 = vrot.slane %v1223, 4
      %v1307 = vrot.slane %v1228, 4
      %v1308 = vsel %vm1305, %v1306, %v1307
      %v1309 = vrot.slane %v1233, 4
      %v1310 = vsel %vm1305, %v1307, %v1309
      %v1311 = vrot.slane %v1238, 4
      %v1312 = vsel %vm1305, %v1309, %v1311
      %vm1317 = vcmask 1042432
      %v1318 = vrot.slane %v1223, 5
      %v1319 = vrot.slane %v1228, 5
      %v1320 = vsel %vm1317, %v1318, %v1319
      %v1321 = vrot.slane %v1233, 5
      %v1322 = vsel %vm1317, %v1319, %v1321
      %v1323 = vrot.slane %v1238, 5
      %v1324 = vsel %vm1317, %v1321, %v1323
      %1325 = vrot.lane.b32.xlu0 %v1320, 32
      %v1326 = vpop.permute.xlu0 %1325
      %1327 = vrot.lane.b32.xlu0 %v1322, 32
      %v1328 = vpop.permute.xlu0 %1327
      %1329 = vrot.lane.b32.xlu0 %v1324, 32
      %v1330 = vpop.permute.xlu0 %1329
      %1331 = vrot.lane.b32.xlu0 %v1323, 32
      %v1332 = vpop.permute.xlu0 %1331
      %vm1337 = vcmask 1041408
      %v1338 = vrot.slane %v1223, 6
      %v1339 = vrot.slane %v1228, 6
      %v1340 = vsel %vm1337, %v1338, %v1339
      %v1341 = vrot.slane %v1233, 6
      %v1342 = vsel %vm1337, %v1339, %v1341
      %v1343 = vrot.slane %v1238, 6
      %v1344 = vsel %vm1337, %v1341, %v1343
      %1345 = vrot.lane.b32.xlu0 %v1340, 64
      %v1346 = vpop.permute.xlu0 %1345
      %1347 = vrot.lane.b32.xlu0 %v1342, 64
      %v1348 = vpop.permute.xlu0 %1347
      %1349 = vrot.lane.b32.xlu0 %v1344, 64
      %v1350 = vpop.permute.xlu0 %1349
      %1351 = vrot.lane.b32.xlu0 %v1343, 64
      %v1352 = vpop.permute.xlu0 %1351
      %vm1357 = vcmask 1040384
      %v1358 = vrot.slane %v1223, 7
      %v1359 = vrot.slane %v1228, 7
      %v1360 = vsel %vm1357, %v1358, %v1359
      %v1361 = vrot.slane %v1233, 7
      %v1362 = vsel %vm1357, %v1359, %v1361
      %v1363 = vrot.slane %v1238, 7
      %v1364 = vsel %vm1357, %v1361, %v1363
      %1365 = vrot.lane.b32.xlu0 %v1360, 96
      %v1366 = vpop.permute.xlu0 %1365
      %1367 = vrot.lane.b32.xlu0 %v1362, 96
      %v1368 = vpop.permute.xlu0 %1367
      %1369 = vrot.lane.b32.xlu0 %v1364, 96
      %v1370 = vpop.permute.xlu0 %1369
      %1371 = vrot.lane.b32.xlu0 %v1363, 96
      %v1372 = vpop.permute.xlu0 %1371
      %vm1377 = vcmask 261120
      %v1378 = vsel %vm1377, %v1223, %v1254
      %v1379 = vsel %vm1377, %v1228, %v1256
      %v1380 = vsel %vm1377, %v1233, %v1258
      %v1381 = vsel %vm1377, %v1238, %v1260
      %vm1382 = vcmask 523264
      %v1383 = vsel %vm1382, %v1378, %v1274
      %v1384 = vsel %vm1382, %v1379, %v1276
      %v1385 = vsel %vm1382, %v1380, %v1278
      %v1386 = vsel %vm1382, %v1381, %v1280
      %vm1387 = vcmask 785408
      %v1388 = vsel %vm1387, %v1383, %v1294
      %v1389 = vsel %vm1387, %v1384, %v1296
      %v1390 = vsel %vm1387, %v1385, %v1298
      %v1391 = vsel %vm1387, %v1386, %v1300
      %v1392 = vsel %vm1377, %v1308, %v1326
      %v1393 = vsel %vm1377, %v1310, %v1328
      %v1394 = vsel %vm1377, %v1312, %v1330
      %v1395 = vsel %vm1377, %v1311, %v1332
      %v1396 = vsel %vm1382, %v1392, %v1346
      %v1397 = vsel %vm1382, %v1393, %v1348
      %v1398 = vsel %vm1382, %v1394, %v1350
      %v1399 = vsel %vm1382, %v1395, %v1352
      %v1400 = vsel %vm1387, %v1396, %v1366
      %v1401 = vsel %vm1387, %v1397, %v1368
      %v1402 = vsel %vm1387, %v1398, %v1370
      %v1403 = vsel %vm1387, %v1399, %v1372
      %v1404 = vld [vmem:[%s5] sm:$0xff]
      %v1405 = vld [vmem:[%s5 + $0x8] sm:$0xff]
      %v1406 = vld [vmem:[%s5 + $0x10] sm:$0xff]
      %v1407 = vld [vmem:[%s5 + $0x18] sm:$0xff]
      %v1408 = vld [vmem:[%s5 + $0x20] sm:$0xff]
      %v1409 = vld [vmem:[%s5 + $0x28] sm:$0xff]
      %v1410 = vld [vmem:[%s5 + $0x30] sm:$0xff]
      %v1411 = vld [vmem:[%s5 + $0x38] sm:$0xff]
      %v1412 = vld [vmem:[%s5 + $0x40] sm:$0xff]
      %v1413 = vld [vmem:[%s5 + $0x48] sm:$0xff]
      %v1414 = vld [vmem:[%s5 + $0x50] sm:$0xff]
      %v1415 = vld [vmem:[%s5 + $0x58] sm:$0xff]
      %v1416 = vld [vmem:[%s5 + $0x60] sm:$0xff]
      %v1417 = vld [vmem:[%s5 + $0x68] sm:$0xff]
      %v1418 = vld [vmem:[%s5 + $0x70] sm:$0xff]
      %v1419 = vld [vmem:[%s5 + $0x78] sm:$0xff]
      %v1420 = vld [vmem:[%s5 + $0x80] sm:$0xff]
      %v1421 = vld [vmem:[%s5 + $0x88] sm:$0xff]
      %v1422 = vld [vmem:[%s5 + $0x90] sm:$0xff]
      %v1423 = vld [vmem:[%s5 + $0x98] sm:$0xff]
      %v1424 = vld [vmem:[%s5 + $0xa0] sm:$0xff]
      %v1425 = vld [vmem:[%s5 + $0xa8] sm:$0xff]
      %v1426 = vld [vmem:[%s5 + $0xb0] sm:$0xff]
      %v1427 = vld [vmem:[%s5 + $0xb8] sm:$0xff]
      %v1428 = vld [vmem:[%s5 + $0xc0] sm:$0xff]
      %v1429 = vld [vmem:[%s5 + $0xc8] sm:$0xff]
      %v1430 = vld [vmem:[%s5 + $0xd0] sm:$0xff]
      %v1431 = vld [vmem:[%s5 + $0xd8] sm:$0xff]
      %v1432 = vld [vmem:[%s5 + $0xe0] sm:$0xff]
      %v1433 = vld [vmem:[%s5 + $0xe8] sm:$0xff]
      %v1434 = vld [vmem:[%s5 + $0xf0] sm:$0xff]
      %v1435 = vld [vmem:[%s5 + $0xf8] sm:$0xff]
      %v1436 = vld [vmem:[%s6] sm:$0x1]
      %v1438 = vlaneseq
      %v1439 = vshrl.u32 %v1438, 7
      %v1440 = vsub.s32 0, %v1439
      %v1441 = vrot.slane %v1436, %v1440
      %1443 = vmatprep.subr.mxu0 0.0
      %1444 = vmatpush1.msra.mxu0 %v1404
      %1445 = vmatprep.subr.mxu0 0.0
      %1446 = vmatpush1.msra.mxu0 %v1405
      %1447 = vmatprep.subr.mxu0 0.0
      %1448 = vmatpush1.msra.mxu0 %v1406
      %1449 = vmatprep.subr.mxu0 0.0
      %1450 = vmatpush1.msra.mxu0 %v1407
      %1451 = vmatprep.subr.mxu0 0.0
      %1452 = vmatpush1.msra.mxu0 %v1408
      %1453 = vmatprep.subr.mxu0 0.0
      %1454 = vmatpush1.msra.mxu0 %v1409
      %1455 = vmatprep.subr.mxu0 0.0
      %1456 = vmatpush1.msra.mxu0 %v1410
      %1457 = vmatprep.subr.mxu0 0.0
      %1458 = vmatpush1.msra.mxu0 %v1411
      %1459 = vmatprep.subr.mxu0 0.0
      %1460 = vmatpush1.msra.mxu0 %v1412
      %1461 = vmatprep.subr.mxu0 0.0
      %1462 = vmatpush1.msra.mxu0 %v1413
      %1463 = vmatprep.subr.mxu0 0.0
      %1464 = vmatpush1.msra.mxu0 %v1414
      %1465 = vmatprep.subr.mxu0 0.0
      %1466 = vmatpush1.msra.mxu0 %v1415
      %1467 = vmatprep.subr.mxu0 0.0
      %1468 = vmatpush1.msra.mxu0 %v1416
      %1469 = vmatprep.subr.mxu0 0.0
      %1470 = vmatpush1.msra.mxu0 %v1417
      %1471 = vmatprep.subr.mxu0 0.0
      %1472 = vmatpush1.msra.mxu0 %v1418
      %1473 = vmatprep.subr.mxu0 0.0
      %1474 = vmatpush1.msra.mxu0 %v1419
      %1475 = vmatprep.subr.mxu0 0.0
      %1476 = vmatpush1.msra.mxu0 %v1420
      %1477 = vmatprep.subr.mxu0 0.0
      %1478 = vmatpush1.msra.mxu0 %v1421
      %1479 = vmatprep.subr.mxu0 0.0
      %1480 = vmatpush1.msra.mxu0 %v1422
      %1481 = vmatprep.subr.mxu0 0.0
      %1482 = vmatpush1.msra.mxu0 %v1423
      %1483 = vmatprep.subr.mxu0 0.0
      %1484 = vmatpush1.msra.mxu0 %v1424
      %1485 = vmatprep.subr.mxu0 0.0
      %1486 = vmatpush1.msra.mxu0 %v1425
      %1487 = vmatprep.subr.mxu0 0.0
      %1488 = vmatpush1.msra.mxu0 %v1426
      %1489 = vmatprep.subr.mxu0 0.0
      %1490 = vmatpush1.msra.mxu0 %v1427
      %1491 = vmatprep.subr.mxu0 0.0
      %1492 = vmatpush1.msra.mxu0 %v1428
      %1493 = vmatprep.subr.mxu0 0.0
      %1494 = vmatpush1.msra.mxu0 %v1429
      %1495 = vmatprep.subr.mxu0 0.0
      %1496 = vmatpush1.msra.mxu0 %v1430
      %1497 = vmatprep.subr.mxu0 0.0
      %1498 = vmatpush1.msra.mxu0 %v1431
      %1499 = vmatprep.subr.mxu0 0.0
      %1500 = vmatpush1.msra.mxu0 %v1432
      %1501 = vmatprep.subr.mxu0 0.0
      %1502 = vmatpush1.msra.mxu0 %v1433
      %1503 = vmatprep.subr.mxu0 0.0
      %1504 = vmatpush1.msra.mxu0 %v1434
      %1505 = vmatprep.subr.mxu0 0.0
      %1506 = vmatpush1.msra.mxu0 %v1435
      %1507 = vmatprep.mubr.f32.mxu0 %v1400
      %1508 = vmatmul.mubr.f32.gmra.mrb[0].mxu0 %v1388
      %v1509 = vpop.f32.mrb[0].mxu0
      %v1510 = vadd.f32 %v1441, %v1509
      %v1511 = vpop.f32.mrb[0].mxu0
      %1512 = vmatprep.mubr.f32.mxu0 %v1401
      %1513 = vmatmul.mubr.f32.gmra.mrb[0].mxu0 %v1389
      %v1514 = vpop.f32.mrb[0].mxu0
      %v1515 = vadd.f32 %v1441, %v1514
      %v1516 = vpop.f32.mrb[0].mxu0
      %1517 = vmatprep.mubr.f32.mxu0 %v1402
      %1518 = vmatmul.mubr.f32.gmra.mrb[0].mxu0 %v1390
      %v1519 = vpop.f32.mrb[0].mxu0
      %v1520 = vadd.f32 %v1441, %v1519
      %v1521 = vpop.f32.mrb[0].mxu0
      %1522 = vmatprep.mubr.f32.mxu0 %v1403
      %1523 = vmatmul.mubr.f32.gmra.mrb[0].mxu0 %v1391
      %v1524 = vpop.f32.mrb[0].mxu0
      %v1525 = vadd.f32 %v1441, %v1524
      %v1526 = vpop.f32.mrb[0].mxu0
      %1527 = vdwg.mxu0
      %v1528 = vmax.f32 %v1510, 0.0
      %v1529 = vmax.f32 %v1515, 0.0
      %v1530 = vmax.f32 %v1520, 0.0
      %v1531 = vmax.f32 %v1525, 0.0
      %v1532 = vld [vmem:[%s7] sm:$0x7]
      %vm1533 = vcmask 203776
      %v1535 = vsel %vm1533, %v1532, 0
      %v1538 = vsel %vm1357, %v1531, 0
      %1540 = vmatprep.subr.mxu0 0.0
      %1541 = vmatpush1.msra.mxu0 %v1528
      %1542 = vmatprep.subr.mxu0 0.0
      %1543 = vmatpush1.msra.mxu0 %v1529
      %1544 = vmatprep.subr.mxu0 0.0
      %1545 = vmatpush1.msra.mxu0 %v1530
      %1546 = vmatprep.subr.mxu0 0.0
      %1547 = vmatpush1.msra.mxu0 %v1538
      %1548 = vmatprep.subr.mxu0 0.0
      %1549 = vmatpush1.msra.mxu0 0.0
      %1550 = vmatprep.subr.mxu0 0.0
      %1551 = vmatpush1.msra.mxu0 0.0
      %1552 = vmatprep.subr.mxu0 0.0
      %1553 = vmatpush1.msra.mxu0 0.0
      %1554 = vmatprep.subr.mxu0 0.0
      %1555 = vmatpush1.msra.mxu0 0.0
      %1556 = vmatprep.subr.mxu0 0.0
      %1557 = vmatpush1.msra.mxu0 0.0
      %1558 = vmatprep.subr.mxu0 0.0
      %1559 = vmatpush1.msra.mxu0 0.0
      %1560 = vmatprep.subr.mxu0 0.0
      %1561 = vmatpush1.msra.mxu0 0.0
      %1562 = vmatprep.subr.mxu0 0.0
      %1563 = vmatpush1.msra.mxu0 0.0
      %1564 = vmatprep.subr.mxu0 0.0
      %1565 = vmatpush1.msra.mxu0 0.0
      %1566 = vmatprep.subr.mxu0 0.0
      %1567 = vmatpush1.msra.mxu0 0.0
      %1568 = vmatprep.subr.mxu0 0.0
      %1569 = vmatpush1.msra.mxu0 0.0
      %1570 = vmatprep.subr.mxu0 0.0
      %1571 = vmatpush1.msra.mxu0 0.0
      %1572 = vmatprep.subr.mxu0 0.0
      %1573 = vmatpush1.msra.mxu0 0.0
      %1574 = vmatprep.subr.mxu0 0.0
      %1575 = vmatpush1.msra.mxu0 0.0
      %1576 = vmatprep.subr.mxu0 0.0
      %1577 = vmatpush1.msra.mxu0 0.0
      %1578 = vmatprep.subr.mxu0 0.0
      %1579 = vmatpush1.msra.mxu0 0.0
      %1580 = vmatprep.subr.mxu0 0.0
      %1581 = vmatpush1.msra.mxu0 0.0
      %1582 = vmatprep.subr.mxu0 0.0
      %1583 = vmatpush1.msra.mxu0 0.0
      %1584 = vmatprep.subr.mxu0 0.0
      %1585 = vmatpush1.msra.mxu0 0.0
      %1586 = vmatprep.subr.mxu0 0.0
      %1587 = vmatpush1.msra.mxu0 0.0
      %1588 = vmatprep.subr.mxu0 0.0
      %1589 = vmatpush1.msra.mxu0 0.0
      %1590 = vmatprep.subr.mxu0 0.0
      %1591 = vmatpush1.msra.mxu0 0.0
      %1592 = vmatprep.subr.mxu0 0.0
      %1593 = vmatpush1.msra.mxu0 0.0
      %1594 = vmatprep.subr.mxu0 0.0
      %1595 = vmatpush1.msra.mxu0 0.0
      %1596 = vmatprep.subr.mxu0 0.0
      %1597 = vmatpush1.msra.mxu0 0.0
      %1598 = vmatprep.subr.mxu0 0.0
      %1599 = vmatpush1.msra.mxu0 0.0
      %1600 = vmatprep.subr.mxu0 0.0
      %1601 = vmatpush1.msra.mxu0 0.0
      %1602 = vmatprep.subr.mxu0 0.0
      %1603 = vmatpush1.msra.mxu0 0.0
      %1604 = vmatprep.mubr.f32.mxu0 0.0
      %1605 = vmatmul.mubr.f32.gmra.mrb[0].mxu0 %v1535
      %v1606 = vpop.f32.mrb[0].mxu0
      %v1607 = vadd.f32 0.0, %v1606
      %v1608 = vpop.f32.mrb[0].mxu0
      %1609 = vdwg.mxu0
      %vm1610 = vcmask 256000
      %1611 = vst.msk [vmem:[%s303] sm:$0x7] %vm1610, %v1607
      %p1612 = scmp.lt.s32.totalorder %s19, 1
      %s1613 = scalar_select %p1612, %s19, 1
      %s1614 = smul.addr %s1613, 4
      %s1615 = scalar_lea.vmem %s8, %s1614
      // Predicated region
      $region53: #{tpu_custom_call.1} parent=51 // pred_check
        %p1616 = pneg %p210
      $region54: #{tpu_custom_call.1} parent=51 // pred_check_branch
        %1618 = sbr.rel (%p1616) target = $region56
      $region55: #{tpu_custom_call.1} parent=51 // pred_region
        _
      $region56: #{tpu_custom_call.1} parent=51 // pred_fallthru
        _
    $region52: #{tpu_custom_call.1} parent=5 // pred_fallthru
      _
    %p1619 = scmp.le.s32.totalorder 2, %s14
    // Predicated region
    $region57: #{tpu_custom_call.1} parent=5 // pred_check
      %p1620 = pneg %p1619
    $region58: #{tpu_custom_call.1} parent=5 // pred_check_branch
      %1622 = sbr.rel (%p1620) target = $region60
    $region59: #{tpu_custom_call.1} parent=5 // pred_region
      %s1623 = ssub.s32 %s14, 2
      // Predicated region
      $region61: #{tpu_custom_call.1} parent=59 // pred_check
        %p1624 = pneg %p216
      $region62: #{tpu_custom_call.1} parent=59 // pred_check_branch
        %1626 = sbr.rel (%p1624) target = $region64
      $region63: #{tpu_custom_call.1} parent=59 // pred_region
        %p1627 = scmp.lt.s32.totalorder %s20, 1
        %s1628 = scalar_select %p1627, %s20, 1
        %s1629 = smul.addr %s1628, 4
        %s1630 = scalar_lea.vmem %s8, %s1629
      $region64: #{tpu_custom_call.1} parent=59 // pred_fallthru
        _
    $region60: #{tpu_custom_call.1} parent=5 // pred_fallthru
      _
  $region6: #{tpu_custom_call.1} parent=0 // loop_footer
    %s18 = sadd.s32 1, %s14
  $region7: #{tpu_custom_call.1} parent=0 // loop_footer_branch
    %13 = sbr.rel target = $region3
  $region8: #{tpu_custom_call.1} parent=0 // loop_exit
    _

</llo_original>
